<compile_context>
chip_gen: v7x
topology: tpu7x:2x2x1
jax: 0.10.0
libtpu: 0.0.40
codegen_flags: <defaults>
</compile_context>

<pallas_src>
import math
from functools import partial

import jax
import jax.numpy as jnp
import numpy as np
from jax.experimental import pallas as pl
from jax.experimental.pallas import tpu as pltpu


def san_attn_kernel(x_ref, ea_ref, wqkv_ref, bqkv_ref, we_ref, be_ref,
                    asrc_ref, adst_ref, exp_ref, expt_ref,
                    out_ref,
                    q_sc, kv_sc, m_sc, l_sc, acc_sc,
                    *, hd_pad, clamp):
    t = pl.program_id(0)

    @pl.when(t == 0)
    def _init():
        # fused (lane-padded) Q|K|V projection, computed once; stored bf16 so
        # the per-tile gathers are pure bf16 MXU matmuls.
        qkv = jnp.dot(x_ref[...], wqkv_ref[...],
                      preferred_element_type=jnp.float32) + bqkv_ref[...]
        q_sc[...] = qkv[:, :hd_pad].astype(jnp.bfloat16)           # (N, HDp)
        kv_sc[...] = qkv[:, hd_pad:].astype(jnp.bfloat16)          # (N, 2*HDp) = [K|V]
        m_sc[...] = jnp.full_like(m_sc, -1e30)                     # per-head running max
        l_sc[...] = jnp.zeros_like(l_sc)                           # running denominator
        acc_sc[...] = jnp.zeros_like(acc_sc)                       # running weighted sum

    a_src = asrc_ref[...]                                          # (TE, N) bf16
    a_dst = adst_ref[...]                                          # (TE, N) bf16

    # fused gather of K|V onto edge sources, Q onto edge destinations
    # (bf16 x bf16 MXU, f32 accumulate; one-hot rows -> exact selection).
    kv_src = jnp.dot(a_src, kv_sc[...], preferred_element_type=jnp.float32)  # (TE, 2*HDp)
    k_src = kv_src[:, :hd_pad]
    v_src = kv_src[:, hd_pad:]
    q_dst = jnp.dot(a_dst, q_sc[...], preferred_element_type=jnp.float32)    # (TE, HDp)

    # per-tile edge-feature projection (f32; tiny contraction dim)
    e_w = jnp.dot(ea_ref[...], we_ref[...],
                  preferred_element_type=jnp.float32) + be_ref[...]          # (TE, HDp)

    score_full = k_src * q_dst * e_w                               # (TE, HDp)
    # head-batched reduction over each head's D lanes; 1/sqrt(D) folded in expt
    s = jnp.dot(score_full, expt_ref[...],
                preferred_element_type=jnp.float32)                # (TE, H)

    if clamp is not None:
        # scores bounded in [-clamp, clamp]: the constant clamp serves as the
        # softmax max -> no running-max state, no rescale.
        s = jnp.clip(s, -clamp, clamp)
        p = jnp.exp(s - clamp)                                     # (TE, H)
        corr_hd = None
    else:
        # per-head running scalar max across tiles (flash-style rescale).
        # TODO(synk): per-node score spreads > ~80 can underflow exp() with a
        # global per-head max; use clamp (or a per-node max) for such data.
        m_tile = jnp.max(s, axis=0, keepdims=True)                 # (1, H)
        m_old = m_sc[...]
        m_new = jnp.maximum(m_old, m_tile)
        corr = jnp.exp(m_old - m_new)                              # (1, H)
        p = jnp.exp(s - m_new)                                     # (TE, H)
        corr_hd = jnp.dot(corr, exp_ref[...],
                          preferred_element_type=jnp.float32)      # (1, HDp)
        m_sc[...] = m_new

    # expand per-head weights along D (block one-hot), form messages, then one
    # fused transposed-LHS scatter-add over destination nodes (bf16 MXU).
    p_full = jnp.dot(p, exp_ref[...], preferred_element_type=jnp.float32)    # (TE, HDp)
    msg = v_src * p_full                                                     # (TE, HDp)
    cat = jnp.concatenate([msg, p_full], axis=1).astype(jnp.bfloat16)        # (TE, 2*HDp)
    scat = jax.lax.dot_general(a_dst, cat,
                               dimension_numbers=(((0,), (0,)), ((), ())),
                               preferred_element_type=jnp.float32)           # (N, 2*HDp)

    if corr_hd is None:
        acc_sc[...] += scat[:, :hd_pad]
        l_sc[...] += scat[:, hd_pad:]
    else:
        acc_sc[...] = corr_hd * acc_sc[...] + scat[:, :hd_pad]
        l_sc[...] = corr_hd * l_sc[...] + scat[:, hd_pad:]

    @pl.when(t == pl.num_programs(0) - 1)
    def _fin():
        # single lane-dense (N, HDp) store; reciprocal on the EUP slot.
        out_ref[...] = acc_sc[...] * pl.reciprocal(l_sc[...] + 1e-16,
                                                   approx=True)


def san_sparse_attention(x, edge_attr, edge_index, params, *,
                         num_heads, out_dim, clamp=None, edge_tile=256):
    n_nodes, in_dim = x.shape
    n_edges = edge_attr.shape[0]
    hd = num_heads * out_dim
    hd_pad = max(128, ((hd + 127) // 128) * 128)     # lane-dense accumulators / stores
    pad_c = hd_pad - hd
    clamp = abs(clamp) if clamp is not None else None

    assert edge_tile % 128 == 0, "edge_tile must be a multiple of 128"
    n_tiles = max(1, pl.cdiv(n_edges, edge_tile))
    e_pad = n_tiles * edge_tile
    pad_e = e_pad - n_edges

    src = edge_index[0].astype(jnp.int32)
    dst = edge_index[1].astype(jnp.int32)
    ea = edge_attr.astype(jnp.float32)
    if pad_e:
        fill = jnp.full((pad_e,), n_nodes, dtype=jnp.int32)   # out-of-range -> all-zero one-hot row (inert)
        src = jnp.concatenate([src, fill])
        dst = jnp.concatenate([dst, fill])
        ea = jnp.pad(ea, ((0, pad_e), (0, 0)))

    # incidence matrices in bf16 (exact 0/1); only two O(E*N) streams remain.
    a_src = jax.nn.one_hot(src, n_nodes, dtype=jnp.bfloat16)      # (E_pad, N)
    a_dst = jax.nn.one_hot(dst, n_nodes, dtype=jnp.bfloat16)      # (E_pad, N)

    # zero-pad projection outputs to hd_pad lanes; fuse Q|K|V into one matmul.
    def pad_cols(a):
        return jnp.pad(a, ((0, 0), (0, pad_c))) if pad_c else a
    w_qkv = jnp.concatenate([pad_cols(params["Wq"]), pad_cols(params["Wk"]),
                             pad_cols(params["Wv"])], axis=1)     # (in_dim, 3*HDp)
    b_qkv = jnp.concatenate([pad_cols(params["bq"]), pad_cols(params["bk"]),
                             pad_cols(params["bv"])], axis=1)     # (1, 3*HDp)
    w_e = pad_cols(params["We"])                                  # (in_dim, HDp)
    b_e = pad_cols(params["be"])                                  # (1, HDp)

    # block one-hot head expansion / (scaled) reduction matrices (MXU operands)
    expand_np = np.zeros((num_heads, hd_pad), np.float32)
    for h in range(num_heads):
        expand_np[h, h * out_dim:(h + 1) * out_dim] = 1.0
    expand = jnp.asarray(expand_np)                               # (H, HDp)
    expand_t = jnp.asarray(expand_np.T / math.sqrt(out_dim))      # (HDp, H), 1/sqrt(D) folded in

    te = edge_tile
    # explicit VMEM budget (re-derive/cap for v7x's 64 MiB per TC)
    f32b, bf16b = 4, 2
    resident = (n_nodes * in_dim + in_dim * 3 * hd_pad + 3 * hd_pad
                + in_dim * hd_pad + hd_pad + 2 * num_heads * hd_pad
                + n_nodes * hd_pad) * f32b
    streamed = te * in_dim * f32b + 2 * te * n_nodes * bf16b      # per pipeline buffer
    scratch = (3 * n_nodes * hd_pad * bf16b
               + 2 * n_nodes * hd_pad * f32b + 8 * 128 * f32b)
    vmem_limit = int(min(112 << 20,
                         max(32 << 20,
                             int(1.5 * (2 * resident + 3 * streamed + scratch)))))

    kernel = partial(san_attn_kernel, hd_pad=hd_pad, clamp=clamp)

    w_v = pl.pallas_call(
        kernel,
        out_shape=jax.ShapeDtypeStruct((n_nodes, hd_pad), jnp.float32),
        grid=(n_tiles,),
        in_specs=[
            pl.BlockSpec((n_nodes, in_dim), lambda t: (0, 0)),        # x (resident)
            pl.BlockSpec((te, in_dim), lambda t: (t, 0)),             # edge_attr tile
            pl.BlockSpec((in_dim, 3 * hd_pad), lambda t: (0, 0)),     # W_[q|k|v] (resident)
            pl.BlockSpec((1, 3 * hd_pad), lambda t: (0, 0)),          # b_[q|k|v]
            pl.BlockSpec((in_dim, hd_pad), lambda t: (0, 0)),         # We
            pl.BlockSpec((1, hd_pad), lambda t: (0, 0)),              # be
            pl.BlockSpec((te, n_nodes), lambda t: (t, 0)),            # A_src tile (bf16)
            pl.BlockSpec((te, n_nodes), lambda t: (t, 0)),            # A_dst tile (bf16)
            pl.BlockSpec((num_heads, hd_pad), lambda t: (0, 0)),      # head expand
            pl.BlockSpec((hd_pad, num_heads), lambda t: (0, 0)),      # head reduce (scaled)
        ],
        out_specs=pl.BlockSpec((n_nodes, hd_pad), lambda t: (0, 0)),  # accumulator-resident
        scratch_shapes=[
            pltpu.VMEM((n_nodes, hd_pad), jnp.bfloat16),      # Q (bf16 gather operand)
            pltpu.VMEM((n_nodes, 2 * hd_pad), jnp.bfloat16),  # [K|V] contiguous
            pltpu.VMEM((1, num_heads), jnp.float32),          # per-head running max
            pltpu.VMEM((n_nodes, hd_pad), jnp.float32),       # running denominator (lane-expanded)
            pltpu.VMEM((n_nodes, hd_pad), jnp.float32),       # running weighted sum
        ],
        compiler_params=pltpu.CompilerParams(
            dimension_semantics=("arbitrary",),               # sequential online reduction
            vmem_limit_bytes=vmem_limit),
    )(x, ea, w_qkv, b_qkv, w_e, b_e, a_src, a_dst, expand, expand_t)

    h_out = w_v[:, :hd].reshape(n_nodes, num_heads, out_dim)
    e_out = None                                  # module never sets batch.wE
    return h_out, e_out


def reference(x, edge_attr, edge_index, params, *, num_heads, out_dim, clamp=None):
    """Pure-JAX reference replicating the PyTorch forward semantics."""
    n_nodes = x.shape[0]
    q = (x @ params["Wq"] + params["bq"]).reshape(-1, num_heads, out_dim)
    k = (x @ params["Wk"] + params["bk"]).reshape(-1, num_heads, out_dim)
    v = (x @ params["Wv"] + params["bv"]).reshape(-1, num_heads, out_dim)
    e_w = (edge_attr @ params["We"] + params["be"]).reshape(-1, num_heads, out_dim)
    src, dst = edge_index[0], edge_index[1]
    score = k[src] * q[dst] / np.sqrt(out_dim)
    score = score * e_w
    score = score.sum(axis=-1, keepdims=True)                          # (E, H, 1)
    if clamp is not None:
        score = jnp.clip(score, -abs(clamp), abs(clamp))
    smax = jax.ops.segment_max(score, dst, num_segments=n_nodes)
    out = jnp.exp(score - smax[dst])
    ssum = jax.ops.segment_sum(out, dst, num_segments=n_nodes)
    alpha = out / (ssum[dst] + 1e-16)
    msg = v[src] * alpha
    w_v = jax.ops.segment_sum(msg, dst, num_segments=n_nodes)
    return w_v


def init_params(key, in_dim, num_heads, out_dim, use_bias=True):
    hd = num_heads * out_dim
    keys = jax.random.split(key, 8)
    std = math.sqrt(2.0 / (in_dim + hd))   # xavier normal (gain=1) on (hd, in_dim) weight
    def w(k):
        # stored pre-transposed as (in_dim, hd)
        return (jax.random.normal(k, (hd, in_dim), jnp.float32) * std).T
    def b(k):
        if not use_bias:
            return jnp.zeros((1, hd), jnp.float32)
        bound = 1.0 / math.sqrt(in_dim)
        return jax.random.uniform(k, (1, hd), jnp.float32, -bound, bound)
    return {
        "Wq": w(keys[0]), "Wk": w(keys[1]), "We": w(keys[2]), "Wv": w(keys[3]),
        "bq": b(keys[4]), "bk": b(keys[5]), "be": b(keys[6]), "bv": b(keys[7]),
    }


if __name__ == "__main__":
    # nodes, in_dim, heads, out_dim, edges (E=200 -> 2 edge tiles of 128,
    # exercising the cross-tile online grouped softmax)
    N, IN_DIM, H, D, E = 64, 32, 4, 8, 200

    key = jax.random.PRNGKey(0)
    k_x, k_ea, k_src, k_dst, k_p = jax.random.split(key, 5)

    x = jax.random.normal(k_x, (N, IN_DIM), jnp.float32)
    edge_attr = jax.random.normal(k_ea, (E, IN_DIM), jnp.float32)
    edge_index = jnp.stack([
        jax.random.randint(k_src, (E,), 0, N, dtype=jnp.int32),
        jax.random.randint(k_dst, (E,), 0, N, dtype=jnp.int32),
    ])

    params = init_params(k_p, IN_DIM, H, D, use_bias=True)

    # test both code paths: clamp=None (running per-head max) and clamp set
    # (constant-max, no rescale state). bf16 MXU operands set the error floor,
    # hence the 2e-2 tolerance.
    for clamp in (None, 2.0):
        h_out, e_out = san_sparse_attention(x, edge_attr, edge_index, params,
                                            num_heads=H, out_dim=D, clamp=clamp,
                                            edge_tile=128)
        h_out = jax.block_until_ready(h_out)

        ref = reference(x, edge_attr, edge_index, params,
                        num_heads=H, out_dim=D, clamp=clamp)
        assert h_out.shape == (N, H, D)
        assert e_out is None
        assert jnp.allclose(h_out, ref, rtol=2e-2, atol=2e-2), \
            f"kernel/reference mismatch (clamp={clamp})"

    print("KERNEL_OK")
</pallas_src>

<mosaic_0001>
module attributes {stable_mosaic.version = 11 : i64} {
  func.func @san_attn_kernel(%arg0: i32, %arg1: memref<64x32xf32, #tpu.memory_space<vmem>>, %arg2: memref<128x32xf32, #tpu.memory_space<vmem>>, %arg3: memref<32x384xf32, #tpu.memory_space<vmem>>, %arg4: memref<1x384xf32, #tpu.memory_space<vmem>>, %arg5: memref<32x128xf32, #tpu.memory_space<vmem>>, %arg6: memref<1x128xf32, #tpu.memory_space<vmem>>, %arg7: memref<128x64xbf16, #tpu.memory_space<vmem>>, %arg8: memref<128x64xbf16, #tpu.memory_space<vmem>>, %arg9: memref<4x128xf32, #tpu.memory_space<vmem>>, %arg10: memref<128x4xf32, #tpu.memory_space<vmem>>, %arg11: memref<64x128xf32, #tpu.memory_space<vmem>>, %arg12: memref<64x128xbf16, #tpu.memory_space<vmem>>, %arg13: memref<64x256xbf16, #tpu.memory_space<vmem>>, %arg14: memref<1x4xf32, #tpu.memory_space<vmem>>, %arg15: memref<64x128xf32, #tpu.memory_space<vmem>>, %arg16: memref<64x128xf32, #tpu.memory_space<vmem>>) attributes {dimension_semantics = [#tpu.dimension_semantics<arbitrary>], iteration_bounds = array<i64: 2>, scalar_prefetch = 0 : i64, scratch_operands = 5 : i64, tpu.core_type = #tpu.core_type<tc>, window_params = [{pipeline_mode = #tpu.pipeline_mode<synchronous>, transform_indices = @transform_0, window_bounds = array<i64: 64, 32>}, {transform_indices = @transform_1, window_bounds = array<i64: 128, 32>}, {pipeline_mode = #tpu.pipeline_mode<synchronous>, transform_indices = @transform_2, window_bounds = array<i64: 32, 384>}, {pipeline_mode = #tpu.pipeline_mode<synchronous>, transform_indices = @transform_3, window_bounds = array<i64: 1, 384>}, {pipeline_mode = #tpu.pipeline_mode<synchronous>, transform_indices = @transform_4, window_bounds = array<i64: 32, 128>}, {pipeline_mode = #tpu.pipeline_mode<synchronous>, transform_indices = @transform_5, window_bounds = array<i64: 1, 128>}, {transform_indices = @transform_6, window_bounds = array<i64: 128, 64>}, {transform_indices = @transform_7, window_bounds = array<i64: 128, 64>}, {pipeline_mode = #tpu.pipeline_mode<synchronous>, transform_indices = @transform_8, window_bounds = array<i64: 4, 128>}, {pipeline_mode = #tpu.pipeline_mode<synchronous>, transform_indices = @transform_9, window_bounds = array<i64: 128, 4>}, {pipeline_mode = #tpu.pipeline_mode<synchronous>, transform_indices = @transform_10, window_bounds = array<i64: 64, 128>}]} {
    %c0_i32 = arith.constant 0 : i32
    %0 = arith.cmpi eq, %arg0, %c0_i32 : i32
    %1 = arith.extui %0 : i1 to i32
    %c0_i32_0 = arith.constant 0 : i32
    %2 = arith.cmpi ne, %1, %c0_i32_0 : i32
    scf.if %2 {
      %c0_40 = arith.constant 0 : index
      %c0_41 = arith.constant 0 : index
      %54 = vector.load %arg1[%c0_40, %c0_41] : memref<64x32xf32, #tpu.memory_space<vmem>>, vector<64x32xf32>
      %c0_42 = arith.constant 0 : index
      %c0_43 = arith.constant 0 : index
      %55 = vector.load %arg3[%c0_42, %c0_43] : memref<32x384xf32, #tpu.memory_space<vmem>>, vector<32x384xf32>
      %cst_44 = arith.constant dense<0.000000e+00> : vector<64x384xf32>
      %56 = tpu.matmul %54, %55, %cst_44 {dimension_numbers = #tpu.dot_dimension_numbers<[1], [0], [0], [1], [0, 0, 1, 1], [], []>} : vector<64x32xf32>, vector<32x384xf32>, vector<64x384xf32> -> vector<64x384xf32>
      %c0_45 = arith.constant 0 : index
      %c0_46 = arith.constant 0 : index
      %57 = vector.load %arg4[%c0_45, %c0_46] : memref<1x384xf32, #tpu.memory_space<vmem>>, vector<1x384xf32>
      %58 = vector.broadcast %57 : vector<1x384xf32> to vector<64x384xf32>
      %59 = arith.addf %56, %58 : vector<64x384xf32>
      %60 = vector.extract_strided_slice %59 {offsets = [0, 0], sizes = [64, 128], strides = [1, 1]} : vector<64x384xf32> to vector<64x128xf32>
      %61 = arith.truncf %60 : vector<64x128xf32> to vector<64x128xbf16>
      %c0_47 = arith.constant 0 : index
      %c0_48 = arith.constant 0 : index
      %62 = vector.load %arg12[%c0_47, %c0_48] : memref<64x128xbf16, #tpu.memory_space<vmem>>, vector<64x128xbf16>
      tpu.vector_store %arg12[%c0_47, %c0_48], %61 {strides = array<i32>} : memref<64x128xbf16, #tpu.memory_space<vmem>>, vector<64x128xbf16>,
      %63 = vector.extract_strided_slice %59 {offsets = [0, 128], sizes = [64, 256], strides = [1, 1]} : vector<64x384xf32> to vector<64x256xf32>
      %64 = arith.truncf %63 : vector<64x256xf32> to vector<64x256xbf16>
      %c0_49 = arith.constant 0 : index
      %c0_50 = arith.constant 0 : index
      %65 = vector.load %arg13[%c0_49, %c0_50] : memref<64x256xbf16, #tpu.memory_space<vmem>>, vector<64x256xbf16>
      tpu.vector_store %arg13[%c0_49, %c0_50], %64 {strides = array<i32>} : memref<64x256xbf16, #tpu.memory_space<vmem>>, vector<64x256xbf16>,
      %cst_51 = arith.constant -1.000000e+30 : f32
      %66 = vector.broadcast %cst_51 : f32 to vector<1x4xf32>
      %c0_52 = arith.constant 0 : index
      %c0_53 = arith.constant 0 : index
      %67 = vector.load %arg14[%c0_52, %c0_53] : memref<1x4xf32, #tpu.memory_space<vmem>>, vector<1x4xf32>
      tpu.vector_store %arg14[%c0_52, %c0_53], %66 {strides = array<i32>} : memref<1x4xf32, #tpu.memory_space<vmem>>, vector<1x4xf32>,
      %cst_54 = arith.constant 0.000000e+00 : f32
      %68 = vector.broadcast %cst_54 : f32 to vector<64x128xf32>
      %c0_55 = arith.constant 0 : index
      %c0_56 = arith.constant 0 : index
      %69 = vector.load %arg15[%c0_55, %c0_56] : memref<64x128xf32, #tpu.memory_space<vmem>>, vector<64x128xf32>
      tpu.vector_store %arg15[%c0_55, %c0_56], %68 {strides = array<i32>} : memref<64x128xf32, #tpu.memory_space<vmem>>, vector<64x128xf32>,
      %cst_57 = arith.constant 0.000000e+00 : f32
      %70 = vector.broadcast %cst_57 : f32 to vector<64x128xf32>
      %c0_58 = arith.constant 0 : index
      %c0_59 = arith.constant 0 : index
      %71 = vector.load %arg16[%c0_58, %c0_59] : memref<64x128xf32, #tpu.memory_space<vmem>>, vector<64x128xf32>
      tpu.vector_store %arg16[%c0_58, %c0_59], %70 {strides = array<i32>} : memref<64x128xf32, #tpu.memory_space<vmem>>, vector<64x128xf32>,
    } else {
    }
    %c0 = arith.constant 0 : index
    %c0_1 = arith.constant 0 : index
    %3 = vector.load %arg7[%c0, %c0_1] : memref<128x64xbf16, #tpu.memory_space<vmem>>, vector<128x64xbf16>
    %c0_2 = arith.constant 0 : index
    %c0_3 = arith.constant 0 : index
    %4 = vector.load %arg8[%c0_2, %c0_3] : memref<128x64xbf16, #tpu.memory_space<vmem>>, vector<128x64xbf16>
    %c0_4 = arith.constant 0 : index
    %c0_5 = arith.constant 0 : index
    %5 = vector.load %arg13[%c0_4, %c0_5] : memref<64x256xbf16, #tpu.memory_space<vmem>>, vector<64x256xbf16>
    %cst = arith.constant dense<0.000000e+00> : vector<128x256xf32>
    %6 = tpu.matmul %3, %5, %cst {dimension_numbers = #tpu.dot_dimension_numbers<[1], [0], [0], [1], [0, 0, 1, 1], [], []>} : vector<128x64xbf16>, vector<64x256xbf16>, vector<128x256xf32> -> vector<128x256xf32>
    %7 = vector.extract_strided_slice %6 {offsets = [0, 0], sizes = [128, 128], strides = [1, 1]} : vector<128x256xf32> to vector<128x128xf32>
    %8 = vector.extract_strided_slice %6 {offsets = [0, 128], sizes = [128, 128], strides = [1, 1]} : vector<128x256xf32> to vector<128x128xf32>
    %c0_6 = arith.constant 0 : index
    %c0_7 = arith.constant 0 : index
    %9 = vector.load %arg12[%c0_6, %c0_7] : memref<64x128xbf16, #tpu.memory_space<vmem>>, vector<64x128xbf16>
    %cst_8 = arith.constant dense<0.000000e+00> : vector<128x128xf32>
    %10 = tpu.matmul %4, %9, %cst_8 {dimension_numbers = #tpu.dot_dimension_numbers<[1], [0], [0], [1], [0, 0, 1, 1], [], []>} : vector<128x64xbf16>, vector<64x128xbf16>, vector<128x128xf32> -> vector<128x128xf32>
    %c0_9 = arith.constant 0 : index
    %c0_10 = arith.constant 0 : index
    %11 = vector.load %arg2[%c0_9, %c0_10] : memref<128x32xf32, #tpu.memory_space<vmem>>, vector<128x32xf32>
    %c0_11 = arith.constant 0 : index
    %c0_12 = arith.constant 0 : index
    %12 = vector.load %arg5[%c0_11, %c0_12] : memref<32x128xf32, #tpu.memory_space<vmem>>, vector<32x128xf32>
    %cst_13 = arith.constant dense<0.000000e+00> : vector<128x128xf32>
    %13 = tpu.matmul %11, %12, %cst_13 {dimension_numbers = #tpu.dot_dimension_numbers<[1], [0], [0], [1], [0, 0, 1, 1], [], []>} : vector<128x32xf32>, vector<32x128xf32>, vector<128x128xf32> -> vector<128x128xf32>
    %c0_14 = arith.constant 0 : index
    %c0_15 = arith.constant 0 : index
    %14 = vector.load %arg6[%c0_14, %c0_15] : memref<1x128xf32, #tpu.memory_space<vmem>>, vector<1x128xf32>
    %15 = vector.broadcast %14 : vector<1x128xf32> to vector<128x128xf32>
    %16 = arith.addf %13, %15 : vector<128x128xf32>
    %17 = arith.mulf %7, %10 : vector<128x128xf32>
    %18 = arith.mulf %17, %16 : vector<128x128xf32>
    %c0_16 = arith.constant 0 : index
    %c0_17 = arith.constant 0 : index
    %19 = vector.load %arg10[%c0_16, %c0_17] : memref<128x4xf32, #tpu.memory_space<vmem>>, vector<128x4xf32>
    %cst_18 = arith.constant dense<0.000000e+00> : vector<128x4xf32>
    %20 = tpu.matmul %18, %19, %cst_18 {dimension_numbers = #tpu.dot_dimension_numbers<[1], [0], [0], [1], [0, 0, 1, 1], [], []>} : vector<128x128xf32>, vector<128x4xf32>, vector<128x4xf32> -> vector<128x4xf32>
    %cst_19 = arith.constant dense<0xFF800000> : vector<4xf32>
    %21 = vector.multi_reduction <maximumf>, %20, %cst_19 [0] : vector<128x4xf32> to vector<4xf32>
    %22 = vector.shape_cast %21 : vector<4xf32> to vector<1x4xf32>
    %c0_20 = arith.constant 0 : index
    %c0_21 = arith.constant 0 : index
    %23 = vector.load %arg14[%c0_20, %c0_21] : memref<1x4xf32, #tpu.memory_space<vmem>>, vector<1x4xf32>
    %24 = arith.maximumf %23, %22 : vector<1x4xf32>
    %25 = arith.subf %23, %24 : vector<1x4xf32>
    %26 = math.exp %25 : vector<1x4xf32>
    %27 = vector.broadcast %24 : vector<1x4xf32> to vector<128x4xf32>
    %28 = arith.subf %20, %27 : vector<128x4xf32>
    %29 = math.exp %28 : vector<128x4xf32>
    %c0_22 = arith.constant 0 : index
    %c0_23 = arith.constant 0 : index
    %30 = vector.load %arg9[%c0_22, %c0_23] : memref<4x128xf32, #tpu.memory_space<vmem>>, vector<4x128xf32>
    %cst_24 = arith.constant dense<0.000000e+00> : vector<1x128xf32>
    %31 = tpu.matmul %26, %30, %cst_24 {dimension_numbers = #tpu.dot_dimension_numbers<[1], [0], [0], [1], [0, 0, 1, 1], [], []>} : vector<1x4xf32>, vector<4x128xf32>, vector<1x128xf32> -> vector<1x128xf32>
    %c0_25 = arith.constant 0 : index
    %c0_26 = arith.constant 0 : index
    %32 = vector.load %arg14[%c0_25, %c0_26] : memref<1x4xf32, #tpu.memory_space<vmem>>, vector<1x4xf32>
    tpu.vector_store %arg14[%c0_25, %c0_26], %24 {strides = array<i32>} : memref<1x4xf32, #tpu.memory_space<vmem>>, vector<1x4xf32>,
    %c0_27 = arith.constant 0 : index
    %c0_28 = arith.constant 0 : index
    %33 = vector.load %arg9[%c0_27, %c0_28] : memref<4x128xf32, #tpu.memory_space<vmem>>, vector<4x128xf32>
    %cst_29 = arith.constant dense<0.000000e+00> : vector<128x128xf32>
    %34 = tpu.matmul %29, %33, %cst_29 {dimension_numbers = #tpu.dot_dimension_numbers<[1], [0], [0], [1], [0, 0, 1, 1], [], []>} : vector<128x4xf32>, vector<4x128xf32>, vector<128x128xf32> -> vector<128x128xf32>
    %35 = arith.mulf %8, %34 : vector<128x128xf32>
    %36 = tpu.concatenate %35, %34 in 1 : vector<128x128xf32>, vector<128x128xf32> -> vector<128x256xf32>
    %37 = arith.truncf %36 : vector<128x256xf32> to vector<128x256xbf16>
    %cst_30 = arith.constant dense<0.000000e+00> : vector<64x256xf32>
    %38 = tpu.matmul %4, %37, %cst_30 {dimension_numbers = #tpu.dot_dimension_numbers<[0], [0], [1], [1], [0, 1, 1, 1], [], []>} : vector<128x64xbf16>, vector<128x256xbf16>, vector<64x256xf32> -> vector<64x256xf32>
    %c0_31 = arith.constant 0 : index
    %c0_32 = arith.constant 0 : index
    %39 = vector.load %arg16[%c0_31, %c0_32] : memref<64x128xf32, #tpu.memory_space<vmem>>, vector<64x128xf32>
    %40 = vector.broadcast %31 : vector<1x128xf32> to vector<64x128xf32>
    %41 = arith.mulf %40, %39 : vector<64x128xf32>
    %42 = vector.extract_strided_slice %38 {offsets = [0, 0], sizes = [64, 128], strides = [1, 1]} : vector<64x256xf32> to vector<64x128xf32>
    %43 = arith.addf %41, %42 : vector<64x128xf32>
    %c0_33 = arith.constant 0 : index
    %c0_34 = arith.constant 0 : index
    %44 = vector.load %arg16[%c0_33, %c0_34] : memref<64x128xf32, #tpu.memory_space<vmem>>, vector<64x128xf32>
    tpu.vector_store %arg16[%c0_33, %c0_34], %43 {strides = array<i32>} : memref<64x128xf32, #tpu.memory_space<vmem>>, vector<64x128xf32>,
    %c0_35 = arith.constant 0 : index
    %c0_36 = arith.constant 0 : index
    %45 = vector.load %arg15[%c0_35, %c0_36] : memref<64x128xf32, #tpu.memory_space<vmem>>, vector<64x128xf32>
    %46 = vector.broadcast %31 : vector<1x128xf32> to vector<64x128xf32>
    %47 = arith.mulf %46, %45 : vector<64x128xf32>
    %48 = vector.extract_strided_slice %38 {offsets = [0, 128], sizes = [64, 128], strides = [1, 1]} : vector<64x256xf32> to vector<64x128xf32>
    %49 = arith.addf %47, %48 : vector<64x128xf32>
    %c0_37 = arith.constant 0 : index
    %c0_38 = arith.constant 0 : index
    %50 = vector.load %arg15[%c0_37, %c0_38] : memref<64x128xf32, #tpu.memory_space<vmem>>, vector<64x128xf32>
    tpu.vector_store %arg15[%c0_37, %c0_38], %49 {strides = array<i32>} : memref<64x128xf32, #tpu.memory_space<vmem>>, vector<64x128xf32>,
    %c1_i32 = arith.constant 1 : i32
    %51 = arith.cmpi eq, %arg0, %c1_i32 : i32
    %52 = arith.extui %51 : i1 to i32
    %c0_i32_39 = arith.constant 0 : i32
    %53 = arith.cmpi ne, %52, %c0_i32_39 : i32
    scf.if %53 {
      %c0_40 = arith.constant 0 : index
      %c0_41 = arith.constant 0 : index
      %54 = vector.load %arg16[%c0_40, %c0_41] : memref<64x128xf32, #tpu.memory_space<vmem>>, vector<64x128xf32>
      %c0_42 = arith.constant 0 : index
      %c0_43 = arith.constant 0 : index
      %55 = vector.load %arg15[%c0_42, %c0_43] : memref<64x128xf32, #tpu.memory_space<vmem>>, vector<64x128xf32>
      %cst_44 = arith.constant 1.000000e-16 : f32
      %56 = vector.broadcast %cst_44 : f32 to vector<64x128xf32>
      %57 = arith.addf %55, %56 : vector<64x128xf32>
      %58 = tpu.reciprocal %57 {approx = true} : vector<64x128xf32> -> vector<64x128xf32>
      %59 = arith.mulf %54, %58 : vector<64x128xf32>
      %c0_45 = arith.constant 0 : index
      %c0_46 = arith.constant 0 : index
      %60 = vector.load %arg11[%c0_45, %c0_46] : memref<64x128xf32, #tpu.memory_space<vmem>>, vector<64x128xf32>
      tpu.vector_store %arg11[%c0_45, %c0_46], %59 {strides = array<i32>} : memref<64x128xf32, #tpu.memory_space<vmem>>, vector<64x128xf32>,
    } else {
    }
    return
  }
  func.func @transform_0(%arg0: i32) -> (i32, i32) {
    %c0_i32 = arith.constant 0 : i32
    %c0_i32_0 = arith.constant 0 : i32
    %c0_i32_1 = arith.constant 0 : i32
    return %c0_i32, %c0_i32_0 : i32, i32
  }
  func.func @transform_1(%arg0: i32) -> (i32, i32) {
    %c0_i32 = arith.constant 0 : i32
    %c0_i32_0 = arith.constant 0 : i32
    return %arg0, %c0_i32 : i32, i32
  }
  func.func @transform_2(%arg0: i32) -> (i32, i32) {
    %c0_i32 = arith.constant 0 : i32
    %c0_i32_0 = arith.constant 0 : i32
    %c0_i32_1 = arith.constant 0 : i32
    return %c0_i32, %c0_i32_0 : i32, i32
  }
  func.func @transform_3(%arg0: i32) -> (i32, i32) {
    %c0_i32 = arith.constant 0 : i32
    %c0_i32_0 = arith.constant 0 : i32
    %c0_i32_1 = arith.constant 0 : i32
    return %c0_i32, %c0_i32_0 : i32, i32
  }
  func.func @transform_4(%arg0: i32) -> (i32, i32) {
    %c0_i32 = arith.constant 0 : i32
    %c0_i32_0 = arith.constant 0 : i32
    %c0_i32_1 = arith.constant 0 : i32
    return %c0_i32, %c0_i32_0 : i32, i32
  }
  func.func @transform_5(%arg0: i32) -> (i32, i32) {
    %c0_i32 = arith.constant 0 : i32
    %c0_i32_0 = arith.constant 0 : i32
    %c0_i32_1 = arith.constant 0 : i32
    return %c0_i32, %c0_i32_0 : i32, i32
  }
  func.func @transform_6(%arg0: i32) -> (i32, i32) {
    %c0_i32 = arith.constant 0 : i32
    %c0_i32_0 = arith.constant 0 : i32
    return %arg0, %c0_i32 : i32, i32
  }
  func.func @transform_7(%arg0: i32) -> (i32, i32) {
    %c0_i32 = arith.constant 0 : i32
    %c0_i32_0 = arith.constant 0 : i32
    return %arg0, %c0_i32 : i32, i32
  }
  func.func @transform_8(%arg0: i32) -> (i32, i32) {
    %c0_i32 = arith.constant 0 : i32
    %c0_i32_0 = arith.constant 0 : i32
    %c0_i32_1 = arith.constant 0 : i32
    return %c0_i32, %c0_i32_0 : i32, i32
  }
  func.func @transform_9(%arg0: i32) -> (i32, i32) {
    %c0_i32 = arith.constant 0 : i32
    %c0_i32_0 = arith.constant 0 : i32
    %c0_i32_1 = arith.constant 0 : i32
    return %c0_i32, %c0_i32_0 : i32, i32
  }
  func.func @transform_10(%arg0: i32) -> (i32, i32) {
    %c0_i32 = arith.constant 0 : i32
    %c0_i32_0 = arith.constant 0 : i32
    %c0_i32_1 = arith.constant 0 : i32
    return %c0_i32, %c0_i32_0 : i32, i32
  }
}

</mosaic_0001>

<llo_original>
// kernel: tpu_custom_call.1
$region0: #{tpu_custom_call.1}
  #allocation0 [shape = 'u32[]', space=smem, size = 0x4, offset = 0x4, fixed_abs, tag = 'smem constant byte address 0x4 - core index']
  #allocation1 [shape = 'u32[144,128]{1,0:T(1,128)}', space=vmem, size = 0x12000, scoped, tag = 'internal scratch']
  #allocation2 [shape = 'bf16[64,128]{1,0:T(16,128)(2,1)}', space=vmem, size = 0x4000, scoped, tag = 'scratch operand']
  #allocation3 [shape = 'bf16[64,256]{1,0:T(16,128)(2,1)}', space=vmem, size = 0x8000, scoped, tag = 'scratch operand']
  #allocation4 [shape = 'f32[1,4]{1,0:T(1,128)}', space=vmem, size = 0x200, scoped, tag = 'scratch operand']
  #allocation5 [shape = 'f32[64,128]{1,0:T(8,128)}', space=vmem, size = 0x8000, scoped, tag = 'scratch operand']
  #allocation6 [shape = 'f32[64,128]{1,0:T(8,128)}', space=vmem, size = 0x8000, scoped, tag = 'scratch operand']
  %s0 = inlined_call_operand.vmem [shape: f32[64,32], index: 0, kind: input, shape index: {}]
  %s1 = inlined_call_operand.vmem [shape: f32[256,32], index: 1, kind: input, shape index: {}]
  %s2 = inlined_call_operand.vmem [shape: f32[32,384], index: 2, kind: input, shape index: {}]
  %s3 = inlined_call_operand.vmem [shape: f32[1,384], index: 3, kind: input, shape index: {}]
  %s4 = inlined_call_operand.vmem [shape: f32[32,128], index: 4, kind: input, shape index: {}]
  %s5 = inlined_call_operand.vmem [shape: f32[1,128], index: 5, kind: input, shape index: {}]
  %s6 = inlined_call_operand.vmem [shape: bf16[256,64], index: 6, kind: input, shape index: {}]
  %s7 = inlined_call_operand.vmem [shape: bf16[256,64], index: 7, kind: input, shape index: {}]
  %s8 = inlined_call_operand.vmem [shape: f32[4,128], index: 8, kind: input, shape index: {}]
  %s9 = inlined_call_operand.vmem [shape: f32[128,4], index: 9, kind: input, shape index: {}]
  %s10 = inlined_call_operand.hbm [shape: f32[64,128], index: 10, kind: output, shape index: {}]
  %s11 = sld [smem:[#allocation0]]
  $region81: #{tpu_custom_call.1} parent=0
    _
  %s13 = ssub.s32 1, %s11
  %s14 = scalar_select 0, %s13, %s11
  $region1: #{tpu_custom_call.1} parent=0
    #allocation7 [shape = 'u8[32768]{0}', space=vmem, size = 0x8000, scoped, tag = 'output window, operand 0, single buffered']
    #allocation8 [shape = 's32[2]{0}', space=sflag, size = 0x8, scoped, tag = 'scoped memory for tpu_custom_call.1']
    %15 = vsyncpa [#allocation8], 0
    loop: start=0, step=1, limit=4
    $region2: #{tpu_custom_call.1} parent=1 // loop_pre_header
      _
    $region3: #{tpu_custom_call.1} parent=1 // loop_header
      %s17 = sphi 0, %s21
      %p18 = scmp.ge.s32.totalorder %s17, 4
      %s25 = sphi 0, %s25
      %s27 = sphi 0, %s25
      %s28 = sphi 0, %s27
      %s42 = sphi 0, %s28
      %s48 = sphi 0, %s50
      %s51 = sphi 0, %s48
      %s52 = sphi 0, %s51
      %s68 = sphi 0, %s52
      %s72 = sphi 0, %s72
      %s74 = sphi 0, %s72
      %s75 = sphi 0, %s74
      %s89 = sphi 0, %s75
      %s93 = sphi 0, %s93
      %s95 = sphi 0, %s93
      %s96 = sphi 0, %s95
      %s110 = sphi 0, %s96
      %s114 = sphi 0, %s114
      %s116 = sphi 0, %s114
      %s117 = sphi 0, %s116
      %s131 = sphi 0, %s117
      %s135 = sphi 0, %s135
      %s137 = sphi 0, %s135
      %s138 = sphi 0, %s137
      %s152 = sphi 0, %s138
      %s158 = sphi 0, %s160
      %s161 = sphi 0, %s158
      %s162 = sphi 0, %s161
      %s178 = sphi 0, %s162
      %s184 = sphi 0, %s186
      %s187 = sphi 0, %s184
      %s188 = sphi 0, %s187
      %s204 = sphi 0, %s188
      %s208 = sphi 0, %s208
      %s210 = sphi 0, %s208
      %s211 = sphi 0, %s210
      %s225 = sphi 0, %s211
      %s229 = sphi 0, %s229
      %s231 = sphi 0, %s229
      %s232 = sphi 0, %s231
      %s246 = sphi 0, %s232
      %s250 = sphi 0, %s250
      %s252 = sphi 0, %s250
      %s253 = sphi 0, %s252
      %s267 = sphi 0, %s253
    $region4: #{tpu_custom_call.1} parent=1 // loop_header_branch
      %20 = sbr.rel (%p18) target = $region8
    $region5: #{tpu_custom_call.1} parent=1 // loop_body
      %s22 = ssub.s32 %s17, 1
      %s23 = ssub.s32 %s17, 2
      %s24 = sadd.s32 %s17, 1
      %s26 = sadd.s32 %s25, 1
      %p29 = scmp.eq.s32.totalorder %s17, 1
      %p30 = scmp.ne.s32.totalorder %s25, %s27
      %p31 = scmp.eq.s32.totalorder %s17, 0
      %p32 = por %p30, %p31
      %p33 = scmp.ne.s32.totalorder %s25, %s27
      %p34 = scmp.eq.s32.totalorder %s22, 1
      %p35 = por %p33, %p34
      %p36 = scmp.ne.s32.totalorder %s27, %s28
      %p37 = scmp.eq.s32.totalorder %s22, 0
      %p38 = por %p36, %p37
      %p39 = scmp.ne.s32.totalorder %s27, %s28
      %p40 = scmp.eq.s32.totalorder %s23, 1
      %p41 = por %p39, %p40
      %p43 = scmp.ne.s32.totalorder %s28, %s42
      %p44 = scmp.eq.s32.totalorder %s23, 0
      %p45 = por %p43, %p44
      %s46 = ssub.s32 %s17, %s24
      %p47 = scmp.eq.s32.totalorder %s46, 0
      %s49 = sadd.s32 %s48, 1
      %s50 = scalar_select %p47, %s48, %s49
      %p53 = pneg %p47
      %p54 = scmp.eq.s32.totalorder %s17, 1
      %p55 = por %p53, %p54
      %p56 = scmp.ne.s32.totalorder %s48, %s51
      %p57 = scmp.eq.s32.totalorder %s17, 0
      %p58 = por %p56, %p57
      %p59 = scmp.ne.s32.totalorder %s48, %s51
      %p60 = scmp.eq.s32.totalorder %s22, 1
      %p61 = por %p59, %p60
      %p62 = scmp.ne.s32.totalorder %s51, %s52
      %p63 = scmp.eq.s32.totalorder %s22, 0
      %p64 = por %p62, %p63
      %p65 = scmp.ne.s32.totalorder %s51, %s52
      %p66 = scmp.eq.s32.totalorder %s23, 1
      %p67 = por %p65, %p66
      %p69 = scmp.ne.s32.totalorder %s52, %s68
      %p70 = scmp.eq.s32.totalorder %s23, 0
      %p71 = por %p69, %p70
      %s73 = sadd.s32 %s72, 1
      %p76 = scmp.eq.s32.totalorder %s17, 1
      %p77 = scmp.ne.s32.totalorder %s72, %s74
      %p78 = scmp.eq.s32.totalorder %s17, 0
      %p79 = por %p77, %p78
      %p80 = scmp.ne.s32.totalorder %s72, %s74
      %p81 = scmp.eq.s32.totalorder %s22, 1
      %p82 = por %p80, %p81
      %p83 = scmp.ne.s32.totalorder %s74, %s75
      %p84 = scmp.eq.s32.totalorder %s22, 0
      %p85 = por %p83, %p84
      %p86 = scmp.ne.s32.totalorder %s74, %s75
      %p87 = scmp.eq.s32.totalorder %s23, 1
      %p88 = por %p86, %p87
      %p90 = scmp.ne.s32.totalorder %s75, %s89
      %p91 = scmp.eq.s32.totalorder %s23, 0
      %p92 = por %p90, %p91
      %s94 = sadd.s32 %s93, 1
      %p97 = scmp.eq.s32.totalorder %s17, 1
      %p98 = scmp.ne.s32.totalorder %s93, %s95
      %p99 = scmp.eq.s32.totalorder %s17, 0
      %p100 = por %p98, %p99
      %p101 = scmp.ne.s32.totalorder %s93, %s95
      %p102 = scmp.eq.s32.totalorder %s22, 1
      %p103 = por %p101, %p102
      %p104 = scmp.ne.s32.totalorder %s95, %s96
      %p105 = scmp.eq.s32.totalorder %s22, 0
      %p106 = por %p104, %p105
      %p107 = scmp.ne.s32.totalorder %s95, %s96
      %p108 = scmp.eq.s32.totalorder %s23, 1
      %p109 = por %p107, %p108
      %p111 = scmp.ne.s32.totalorder %s96, %s110
      %p112 = scmp.eq.s32.totalorder %s23, 0
      %p113 = por %p111, %p112
      %s115 = sadd.s32 %s114, 1
      %p118 = scmp.eq.s32.totalorder %s17, 1
      %p119 = scmp.ne.s32.totalorder %s114, %s116
      %p120 = scmp.eq.s32.totalorder %s17, 0
      %p121 = por %p119, %p120
      %p122 = scmp.ne.s32.totalorder %s114, %s116
      %p123 = scmp.eq.s32.totalorder %s22, 1
      %p124 = por %p122, %p123
      %p125 = scmp.ne.s32.totalorder %s116, %s117
      %p126 = scmp.eq.s32.totalorder %s22, 0
      %p127 = por %p125, %p126
      %p128 = scmp.ne.s32.totalorder %s116, %s117
      %p129 = scmp.eq.s32.totalorder %s23, 1
      %p130 = por %p128, %p129
      %p132 = scmp.ne.s32.totalorder %s117, %s131
      %p133 = scmp.eq.s32.totalorder %s23, 0
      %p134 = por %p132, %p133
      %s136 = sadd.s32 %s135, 1
      %p139 = scmp.eq.s32.totalorder %s17, 1
      %p140 = scmp.ne.s32.totalorder %s135, %s137
      %p141 = scmp.eq.s32.totalorder %s17, 0
      %p142 = por %p140, %p141
      %p143 = scmp.ne.s32.totalorder %s135, %s137
      %p144 = scmp.eq.s32.totalorder %s22, 1
      %p145 = por %p143, %p144
      %p146 = scmp.ne.s32.totalorder %s137, %s138
      %p147 = scmp.eq.s32.totalorder %s22, 0
      %p148 = por %p146, %p147
      %p149 = scmp.ne.s32.totalorder %s137, %s138
      %p150 = scmp.eq.s32.totalorder %s23, 1
      %p151 = por %p149, %p150
      %p153 = scmp.ne.s32.totalorder %s138, %s152
      %p154 = scmp.eq.s32.totalorder %s23, 0
      %p155 = por %p153, %p154
      %s156 = ssub.s32 %s17, %s24
      %p157 = scmp.eq.s32.totalorder %s156, 0
      %s159 = sadd.s32 %s158, 1
      %s160 = scalar_select %p157, %s158, %s159
      %p163 = pneg %p157
      %p164 = scmp.eq.s32.totalorder %s17, 1
      %p165 = por %p163, %p164
      %p166 = scmp.ne.s32.totalorder %s158, %s161
      %p167 = scmp.eq.s32.totalorder %s17, 0
      %p168 = por %p166, %p167
      %p169 = scmp.ne.s32.totalorder %s158, %s161
      %p170 = scmp.eq.s32.totalorder %s22, 1
      %p171 = por %p169, %p170
      %p172 = scmp.ne.s32.totalorder %s161, %s162
      %p173 = scmp.eq.s32.totalorder %s22, 0
      %p174 = por %p172, %p173
      %p175 = scmp.ne.s32.totalorder %s161, %s162
      %p176 = scmp.eq.s32.totalorder %s23, 1
      %p177 = por %p175, %p176
      %p179 = scmp.ne.s32.totalorder %s162, %s178
      %p180 = scmp.eq.s32.totalorder %s23, 0
      %p181 = por %p179, %p180
      %s182 = ssub.s32 %s17, %s24
      %p183 = scmp.eq.s32.totalorder %s182, 0
      %s185 = sadd.s32 %s184, 1
      %s186 = scalar_select %p183, %s184, %s185
      %p189 = pneg %p183
      %p190 = scmp.eq.s32.totalorder %s17, 1
      %p191 = por %p189, %p190
      %p192 = scmp.ne.s32.totalorder %s184, %s187
      %p193 = scmp.eq.s32.totalorder %s17, 0
      %p194 = por %p192, %p193
      %p195 = scmp.ne.s32.totalorder %s184, %s187
      %p196 = scmp.eq.s32.totalorder %s22, 1
      %p197 = por %p195, %p196
      %p198 = scmp.ne.s32.totalorder %s187, %s188
      %p199 = scmp.eq.s32.totalorder %s22, 0
      %p200 = por %p198, %p199
      %p201 = scmp.ne.s32.totalorder %s187, %s188
      %p202 = scmp.eq.s32.totalorder %s23, 1
      %p203 = por %p201, %p202
      %p205 = scmp.ne.s32.totalorder %s188, %s204
      %p206 = scmp.eq.s32.totalorder %s23, 0
      %p207 = por %p205, %p206
      %s209 = sadd.s32 %s208, 1
      %p212 = scmp.eq.s32.totalorder %s17, 1
      %p213 = scmp.ne.s32.totalorder %s208, %s210
      %p214 = scmp.eq.s32.totalorder %s17, 0
      %p215 = por %p213, %p214
      %p216 = scmp.ne.s32.totalorder %s208, %s210
      %p217 = scmp.eq.s32.totalorder %s22, 1
      %p218 = por %p216, %p217
      %p219 = scmp.ne.s32.totalorder %s210, %s211
      %p220 = scmp.eq.s32.totalorder %s22, 0
      %p221 = por %p219, %p220
      %p222 = scmp.ne.s32.totalorder %s210, %s211
      %p223 = scmp.eq.s32.totalorder %s23, 1
      %p224 = por %p222, %p223
      %p226 = scmp.ne.s32.totalorder %s211, %s225
      %p227 = scmp.eq.s32.totalorder %s23, 0
      %p228 = por %p226, %p227
      %s230 = sadd.s32 %s229, 1
      %p233 = scmp.eq.s32.totalorder %s17, 1
      %p234 = scmp.ne.s32.totalorder %s229, %s231
      %p235 = scmp.eq.s32.totalorder %s17, 0
      %p236 = por %p234, %p235
      %p237 = scmp.ne.s32.totalorder %s229, %s231
      %p238 = scmp.eq.s32.totalorder %s22, 1
      %p239 = por %p237, %p238
      %p240 = scmp.ne.s32.totalorder %s231, %s232
      %p241 = scmp.eq.s32.totalorder %s22, 0
      %p242 = por %p240, %p241
      %p243 = scmp.ne.s32.totalorder %s231, %s232
      %p244 = scmp.eq.s32.totalorder %s23, 1
      %p245 = por %p243, %p244
      %p247 = scmp.ne.s32.totalorder %s232, %s246
      %p248 = scmp.eq.s32.totalorder %s23, 0
      %p249 = por %p247, %p248
      %s251 = sadd.s32 %s250, 1
      %p254 = scmp.eq.s32.totalorder %s17, 1
      %p255 = scmp.ne.s32.totalorder %s250, %s252
      %p256 = scmp.eq.s32.totalorder %s17, 0
      %p257 = por %p255, %p256
      %p258 = scmp.ne.s32.totalorder %s250, %s252
      %p259 = scmp.eq.s32.totalorder %s22, 1
      %p260 = por %p258, %p259
      %p261 = scmp.ne.s32.totalorder %s252, %s253
      %p262 = scmp.eq.s32.totalorder %s22, 0
      %p263 = por %p261, %p262
      %p264 = scmp.ne.s32.totalorder %s252, %s253
      %p265 = scmp.eq.s32.totalorder %s23, 1
      %p266 = por %p264, %p265
      %p268 = scmp.ne.s32.totalorder %s253, %s267
      %p269 = scmp.eq.s32.totalorder %s23, 0
      %p270 = por %p268, %p269
      %p271 = scmp.le.s32.totalorder 1, %s17
      %p272 = scmp.lt.s32.totalorder %s17, 3
      %p273 = pnand %p271, %p272
      %p274 = pneg %p273
      // Predicated region
      $region9: #{tpu_custom_call.1} parent=5 // pred_check
        _
      $region10: #{tpu_custom_call.1} parent=5 // pred_check_branch
        %276 = sbr.rel (%p273) target = $region12
      $region11: #{tpu_custom_call.1} parent=5 // pred_region
        %s277 = ssub.s32 %s17, 1
        // Predicated region
        $region13: #{tpu_custom_call.1} parent=11 // pred_check
          %p278 = pneg %p38
        $region14: #{tpu_custom_call.1} parent=11 // pred_check_branch
          %280 = sbr.rel (%p278) target = $region16
        $region15: #{tpu_custom_call.1} parent=11 // pred_region
          _
        $region16: #{tpu_custom_call.1} parent=11 // pred_fallthru
          _
        // Predicated region
        $region17: #{tpu_custom_call.1} parent=11 // pred_check
          %p281 = pneg %p85
        $region18: #{tpu_custom_call.1} parent=11 // pred_check_branch
          %283 = sbr.rel (%p281) target = $region20
        $region19: #{tpu_custom_call.1} parent=11 // pred_region
          _
        $region20: #{tpu_custom_call.1} parent=11 // pred_fallthru
          _
        // Predicated region
        $region21: #{tpu_custom_call.1} parent=11 // pred_check
          %p284 = pneg %p106
        $region22: #{tpu_custom_call.1} parent=11 // pred_check_branch
          %286 = sbr.rel (%p284) target = $region24
        $region23: #{tpu_custom_call.1} parent=11 // pred_region
          _
        $region24: #{tpu_custom_call.1} parent=11 // pred_fallthru
          _
        // Predicated region
        $region25: #{tpu_custom_call.1} parent=11 // pred_check
          %p287 = pneg %p127
        $region26: #{tpu_custom_call.1} parent=11 // pred_check_branch
          %289 = sbr.rel (%p287) target = $region28
        $region27: #{tpu_custom_call.1} parent=11 // pred_region
          _
        $region28: #{tpu_custom_call.1} parent=11 // pred_fallthru
          _
        // Predicated region
        $region29: #{tpu_custom_call.1} parent=11 // pred_check
          %p290 = pneg %p148
        $region30: #{tpu_custom_call.1} parent=11 // pred_check_branch
          %292 = sbr.rel (%p290) target = $region32
        $region31: #{tpu_custom_call.1} parent=11 // pred_region
          _
        $region32: #{tpu_custom_call.1} parent=11 // pred_fallthru
          _
        // Predicated region
        $region33: #{tpu_custom_call.1} parent=11 // pred_check
          %p293 = pneg %p221
        $region34: #{tpu_custom_call.1} parent=11 // pred_check_branch
          %295 = sbr.rel (%p293) target = $region36
        $region35: #{tpu_custom_call.1} parent=11 // pred_region
          _
        $region36: #{tpu_custom_call.1} parent=11 // pred_fallthru
          _
        // Predicated region
        $region37: #{tpu_custom_call.1} parent=11 // pred_check
          %p296 = pneg %p242
        $region38: #{tpu_custom_call.1} parent=11 // pred_check_branch
          %298 = sbr.rel (%p296) target = $region40
        $region39: #{tpu_custom_call.1} parent=11 // pred_region
          _
        $region40: #{tpu_custom_call.1} parent=11 // pred_fallthru
          _
      $region12: #{tpu_custom_call.1} parent=5 // pred_fallthru
        _
      %p299 = scmp.lt.s32.totalorder %s17, 2
      // Predicated region
      $region41: #{tpu_custom_call.1} parent=5 // pred_check
        %p300 = pneg %p299
      $region42: #{tpu_custom_call.1} parent=5 // pred_check_branch
        %302 = sbr.rel (%p300) target = $region44
      $region43: #{tpu_custom_call.1} parent=5 // pred_region
        // Predicated region
        $region45: #{tpu_custom_call.1} parent=43 // pred_check
          %p303 = pneg %p58
        $region46: #{tpu_custom_call.1} parent=43 // pred_check_branch
          %305 = sbr.rel (%p303) target = $region48
        $region47: #{tpu_custom_call.1} parent=43 // pred_region
          %s306 = smul.u32 16, %s17
          %p307 = scmp.lt.s32.totalorder %s306, 31
          %s308 = scalar_select %p307, %s306, 31
          %s309 = smul.addr %s308, 8
          %s310 = scalar_lea.vmem %s1, %s309
          %s311 = smul.u32 16, %s17
        $region48: #{tpu_custom_call.1} parent=43 // pred_fallthru
          _
        // Predicated region
        $region49: #{tpu_custom_call.1} parent=43 // pred_check
          %p312 = pneg %p168
        $region50: #{tpu_custom_call.1} parent=43 // pred_check_branch
          %314 = sbr.rel (%p312) target = $region52
        $region51: #{tpu_custom_call.1} parent=43 // pred_region
          %s315 = smul.u32 16, %s17
          %p316 = scmp.lt.s32.totalorder %s315, 31
          %s317 = scalar_select %p316, %s315, 31
          %s318 = smul.addr %s317, 4
          %s319 = scalar_lea.vmem %s6, %s318
          %s320 = smul.u32 16, %s17
        $region52: #{tpu_custom_call.1} parent=43 // pred_fallthru
          _
        // Predicated region
        $region53: #{tpu_custom_call.1} parent=43 // pred_check
          %p321 = pneg %p194
        $region54: #{tpu_custom_call.1} parent=43 // pred_check_branch
          %323 = sbr.rel (%p321) target = $region56
        $region55: #{tpu_custom_call.1} parent=43 // pred_region
          %s324 = smul.u32 16, %s17
          %p325 = scmp.lt.s32.totalorder %s324, 31
          %s326 = scalar_select %p325, %s324, 31
          %s327 = smul.addr %s326, 4
          %s328 = scalar_lea.vmem %s7, %s327
          %s329 = smul.u32 16, %s17
        $region56: #{tpu_custom_call.1} parent=43 // pred_fallthru
          _
      $region44: #{tpu_custom_call.1} parent=5 // pred_fallthru
        _
      %p330 = scmp.le.s32.totalorder 1, %s17
      %p331 = scmp.lt.s32.totalorder %s17, 3
      %p332 = pnand %p330, %p331
      %p333 = pneg %p332
      // Predicated region
      $region57: #{tpu_custom_call.1} parent=5 // pred_check
        _
      $region58: #{tpu_custom_call.1} parent=5 // pred_check_branch
        %335 = sbr.rel (%p332) target = $region60
      $region59: #{tpu_custom_call.1} parent=5 // pred_region
        %s336 = ssub.s32 %s17, 1
        %p337 = pneg %p38
        %p338 = pneg %p35
        %s339 = smul.u32 16, %s22
        %p340 = scmp.lt.s32.totalorder %s339, 31
        %s341 = scalar_select %p340, %s339, 31
        %s342 = smul.addr %s341, 8
        %s343 = scalar_lea.vmem %s1, %s342
        %p344 = pneg %p64
        %p345 = pneg %p61
        %p346 = pneg %p85
        %p347 = pneg %p82
        %p348 = pneg %p106
        %p349 = pneg %p103
        %p350 = pneg %p127
        %p351 = pneg %p124
        %p352 = pneg %p148
        %p353 = pneg %p145
        %s354 = smul.u32 16, %s22
        %p355 = scmp.lt.s32.totalorder %s354, 31
        %s356 = scalar_select %p355, %s354, 31
        %s357 = smul.addr %s356, 4
        %s358 = scalar_lea.vmem %s6, %s357
        %p359 = pneg %p174
        %p360 = pneg %p171
        %s361 = smul.u32 16, %s22
        %p362 = scmp.lt.s32.totalorder %s361, 31
        %s363 = scalar_select %p362, %s361, 31
        %s364 = smul.addr %s363, 4
        %s365 = scalar_lea.vmem %s7, %s364
        %p366 = pneg %p200
        %p367 = pneg %p197
        %p368 = pneg %p221
        %p369 = pneg %p218
        %p370 = pneg %p242
        %p371 = pneg %p239
        %p372 = pneg %p263
        %p373 = pneg %p260
        %s374 = smul.u32 16, %s22
        %p375 = scmp.lt.s32.totalorder %s374, 31
        %s376 = scalar_select %p375, %s374, 31
        %s377 = smul.addr %s376, 8
        %s378 = scalar_lea.vmem %s1, %s377
        %s379 = smul.u32 16, %s22
        %s380 = smul.u32 16, %s22
        %p381 = scmp.lt.s32.totalorder %s380, 31
        %s382 = scalar_select %p381, %s380, 31
        %s383 = smul.addr %s382, 4
        %s384 = scalar_lea.vmem %s6, %s383
        %s385 = smul.u32 16, %s22
        %s386 = smul.u32 16, %s22
        %p387 = scmp.lt.s32.totalorder %s386, 31
        %s388 = scalar_select %p387, %s386, 31
        %s389 = smul.addr %s388, 4
        %s390 = scalar_lea.vmem %s7, %s389
        %s391 = smul.u32 16, %s22
        %p393 = scmp.eq.s32.totalorder %s22, 0
        // Predicated region
        $region61: #{tpu_custom_call.1} parent=59 // pred_check
          %p394 = pneg %p393
        $region62: #{tpu_custom_call.1} parent=59 // pred_check_branch
          %396 = sbr.rel (%p394) target = $region64
        $region63: #{tpu_custom_call.1} parent=59 // pred_region
          %v397 = vld [vmem:[%s0] sm:$0xff]
          %v398 = vld [vmem:[%s0 + $0x8] sm:$0xff]
          %v399 = vld [vmem:[%s0 + $0x10] sm:$0xff]
          %v400 = vld [vmem:[%s0 + $0x18] sm:$0xff]
          %v401 = vld [vmem:[%s0 + $0x20] sm:$0xff]
          %v402 = vld [vmem:[%s0 + $0x28] sm:$0xff]
          %v403 = vld [vmem:[%s0 + $0x30] sm:$0xff]
          %v404 = vld [vmem:[%s0 + $0x38] sm:$0xff]
          %v405 = vld [vmem:[%s2] sm:$0xff]
          %v406 = vld [vmem:[%s2 + $0x8] sm:$0xff]
          %v407 = vld [vmem:[%s2 + $0x10] sm:$0xff]
          %v408 = vld [vmem:[%s2 + $0x18] sm:$0xff]
          %v409 = vld [vmem:[%s2 + $0x20] sm:$0xff]
          %v410 = vld [vmem:[%s2 + $0x28] sm:$0xff]
          %v411 = vld [vmem:[%s2 + $0x30] sm:$0xff]
          %v412 = vld [vmem:[%s2 + $0x38] sm:$0xff]
          %v413 = vld [vmem:[%s2 + $0x40] sm:$0xff]
          %v414 = vld [vmem:[%s2 + $0x48] sm:$0xff]
          %v415 = vld [vmem:[%s2 + $0x50] sm:$0xff]
          %v416 = vld [vmem:[%s2 + $0x58] sm:$0xff]
          %v417 = vld [vmem:[%s3] sm:$0x7]
          %v419 = vlaneseq
          %v420 = vshrl.u32 %v419, 7
          %v421 = vsub.s32 0, %v420
          %v422 = vrot.slane %v417, %v421
          %v423 = vlaneseq
          %v424 = vshrl.u32 %v423, 7
          %v425 = vsub.s32 1, %v424
          %v426 = vrot.slane %v417, %v425
          %v427 = vlaneseq
          %v428 = vshrl.u32 %v427, 7
          %v429 = vsub.s32 2, %v428
          %v430 = vrot.slane %v417, %v429
          %vm434 = vcmask 261120
          %v436 = vsel %vm434, %v397, 0
          %v439 = vsel %vm434, %v398, 0
          %v442 = vsel %vm434, %v399, 0
          %v445 = vsel %vm434, %v400, 0
          %v448 = vsel %vm434, %v401, 0
          %v451 = vsel %vm434, %v402, 0
          %v454 = vsel %vm434, %v403, 0
          %v457 = vsel %vm434, %v404, 0
          %459 = vmatprep.subr.mxu0 %v406
          %460 = vmatpush1.msra.mxu0 %v405
          %461 = vmatprep.subr.mxu0 %v409
          %462 = vmatpush1.msra.mxu0 %v408
          %463 = vmatprep.subr.mxu0 %v412
          %464 = vmatpush1.msra.mxu0 %v411
          %465 = vmatprep.subr.mxu0 %v415
          %466 = vmatpush1.msra.mxu0 %v414
          %467 = vmatprep.subr.mxu0 0.0
          %468 = vmatpush1.msra.mxu0 0.0
          %469 = vmatprep.subr.mxu0 0.0
          %470 = vmatpush1.msra.mxu0 0.0
          %471 = vmatprep.subr.mxu0 0.0
          %472 = vmatpush1.msra.mxu0 0.0
          %473 = vmatprep.subr.mxu0 0.0
          %474 = vmatpush1.msra.mxu0 0.0
          %475 = vmatprep.subr.mxu0 0.0
          %476 = vmatpush1.msra.mxu0 0.0
          %477 = vmatprep.subr.mxu0 0.0
          %478 = vmatpush1.msra.mxu0 0.0
          %479 = vmatprep.subr.mxu0 0.0
          %480 = vmatpush1.msra.mxu0 0.0
          %481 = vmatprep.subr.mxu0 0.0
          %482 = vmatpush1.msra.mxu0 0.0
          %483 = vmatprep.subr.mxu0 0.0
          %484 = vmatpush1.msra.mxu0 0.0
          %485 = vmatprep.subr.mxu0 0.0
          %486 = vmatpush1.msra.mxu0 0.0
          %487 = vmatprep.subr.mxu0 0.0
          %488 = vmatpush1.msra.mxu0 0.0
          %489 = vmatprep.subr.mxu0 0.0
          %490 = vmatpush1.msra.mxu0 0.0
          %491 = vmatprep.subr.mxu0 0.0
          %492 = vmatpush1.msra.mxu0 0.0
          %493 = vmatprep.subr.mxu0 0.0
          %494 = vmatpush1.msra.mxu0 0.0
          %495 = vmatprep.subr.mxu0 0.0
          %496 = vmatpush1.msra.mxu0 0.0
          %497 = vmatprep.subr.mxu0 0.0
          %498 = vmatpush1.msra.mxu0 0.0
          %499 = vmatprep.subr.mxu0 0.0
          %500 = vmatpush1.msra.mxu0 0.0
          %501 = vmatprep.subr.mxu0 0.0
          %502 = vmatpush1.msra.mxu0 0.0
          %503 = vmatprep.subr.mxu0 0.0
          %504 = vmatpush1.msra.mxu0 0.0
          %505 = vmatprep.subr.mxu0 0.0
          %506 = vmatpush1.msra.mxu0 0.0
          %507 = vmatprep.subr.mxu0 0.0
          %508 = vmatpush1.msra.mxu0 0.0
          %509 = vmatprep.subr.mxu0 0.0
          %510 = vmatpush1.msra.mxu0 0.0
          %511 = vmatprep.subr.mxu0 0.0
          %512 = vmatpush1.msra.mxu0 0.0
          %513 = vmatprep.subr.mxu0 0.0
          %514 = vmatpush1.msra.mxu0 0.0
          %515 = vmatprep.subr.mxu0 0.0
          %516 = vmatpush1.msra.mxu0 0.0
          %517 = vmatprep.subr.mxu0 0.0
          %518 = vmatpush1.msra.mxu0 0.0
          %519 = vmatprep.subr.mxu0 0.0
          %520 = vmatpush1.msra.mxu0 0.0
          %521 = vmatprep.subr.mxu0 0.0
          %522 = vmatpush1.msra.mxu0 0.0
          %523 = vmatprep.mubr.f32.mxu0 0.0
          %524 = vmatmul.mubr.f32.gmra.mrb[0].mxu0 %v436
          %v525 = vpop.f32.mrb[0].mxu0
          %v526 = vadd.f32 %v422, %v525
          %v527 = vpop.f32.mrb[0].mxu0
          %v528 = vadd.f32 %v426, %v527
          %529 = vmatprep.mubr.f32.mxu0 0.0
          %530 = vmatmul.mubr.f32.gmra.mrb[0].mxu0 %v439
          %v531 = vpop.f32.mrb[0].mxu0
          %v532 = vadd.f32 %v422, %v531
          %v533 = vpop.f32.mrb[0].mxu0
          %v534 = vadd.f32 %v426, %v533
          %535 = vmatprep.mubr.f32.mxu0 0.0
          %536 = vmatmul.mubr.f32.gmra.mrb[0].mxu0 %v442
          %v537 = vpop.f32.mrb[0].mxu0
          %v538 = vadd.f32 %v422, %v537
          %v539 = vpop.f32.mrb[0].mxu0
          %v540 = vadd.f32 %v426, %v539
          %541 = vmatprep.mubr.f32.mxu0 0.0
          %542 = vmatmul.mubr.f32.gmra.mrb[0].mxu0 %v445
          %v543 = vpop.f32.mrb[0].mxu0
          %v544 = vadd.f32 %v422, %v543
          %v545 = vpop.f32.mrb[0].mxu0
          %v546 = vadd.f32 %v426, %v545
          %547 = vmatprep.mubr.f32.mxu0 0.0
          %548 = vmatmul.mubr.f32.gmra.mrb[0].mxu0 %v448
          %v549 = vpop.f32.mrb[0].mxu0
          %v550 = vadd.f32 %v422, %v549
          %v551 = vpop.f32.mrb[0].mxu0
          %v552 = vadd.f32 %v426, %v551
          %553 = vmatprep.mubr.f32.mxu0 0.0
          %554 = vmatmul.mubr.f32.gmra.mrb[0].mxu0 %v451
          %v555 = vpop.f32.mrb[0].mxu0
          %v556 = vadd.f32 %v422, %v555
          %v557 = vpop.f32.mrb[0].mxu0
          %v558 = vadd.f32 %v426, %v557
          %559 = vmatprep.mubr.f32.mxu0 0.0
          %560 = vmatmul.mubr.f32.gmra.mrb[0].mxu0 %v454
          %v561 = vpop.f32.mrb[0].mxu0
          %v562 = vadd.f32 %v422, %v561
          %v563 = vpop.f32.mrb[0].mxu0
          %v564 = vadd.f32 %v426, %v563
          %565 = vmatprep.mubr.f32.mxu0 0.0
          %566 = vmatmul.mubr.f32.gmra.mrb[0].mxu0 %v457
          %v567 = vpop.f32.mrb[0].mxu0
          %v568 = vadd.f32 %v422, %v567
          %v569 = vpop.f32.mrb[0].mxu0
          %v570 = vadd.f32 %v426, %v569
          %571 = vdwg.mxu0
          %572 = vmatprep.subr.mxu0 0.0
          %573 = vmatpush1.msra.mxu0 %v407
          %574 = vmatprep.subr.mxu0 0.0
          %575 = vmatpush1.msra.mxu0 %v410
          %576 = vmatprep.subr.mxu0 0.0
          %577 = vmatpush1.msra.mxu0 %v413
          %578 = vmatprep.subr.mxu0 0.0
          %579 = vmatpush1.msra.mxu0 %v416
          %580 = vmatprep.subr.mxu0 0.0
          %581 = vmatpush1.msra.mxu0 0.0
          %582 = vmatprep.subr.mxu0 0.0
          %583 = vmatpush1.msra.mxu0 0.0
          %584 = vmatprep.subr.mxu0 0.0
          %585 = vmatpush1.msra.mxu0 0.0
          %586 = vmatprep.subr.mxu0 0.0
          %587 = vmatpush1.msra.mxu0 0.0
          %588 = vmatprep.subr.mxu0 0.0
          %589 = vmatpush1.msra.mxu0 0.0
          %590 = vmatprep.subr.mxu0 0.0
          %591 = vmatpush1.msra.mxu0 0.0
          %592 = vmatprep.subr.mxu0 0.0
          %593 = vmatpush1.msra.mxu0 0.0
          %594 = vmatprep.subr.mxu0 0.0
          %595 = vmatpush1.msra.mxu0 0.0
          %596 = vmatprep.subr.mxu0 0.0
          %597 = vmatpush1.msra.mxu0 0.0
          %598 = vmatprep.subr.mxu0 0.0
          %599 = vmatpush1.msra.mxu0 0.0
          %600 = vmatprep.subr.mxu0 0.0
          %601 = vmatpush1.msra.mxu0 0.0
          %602 = vmatprep.subr.mxu0 0.0
          %603 = vmatpush1.msra.mxu0 0.0
          %604 = vmatprep.subr.mxu0 0.0
          %605 = vmatpush1.msra.mxu0 0.0
          %606 = vmatprep.subr.mxu0 0.0
          %607 = vmatpush1.msra.mxu0 0.0
          %608 = vmatprep.subr.mxu0 0.0
          %609 = vmatpush1.msra.mxu0 0.0
          %610 = vmatprep.subr.mxu0 0.0
          %611 = vmatpush1.msra.mxu0 0.0
          %612 = vmatprep.subr.mxu0 0.0
          %613 = vmatpush1.msra.mxu0 0.0
          %614 = vmatprep.subr.mxu0 0.0
          %615 = vmatpush1.msra.mxu0 0.0
          %616 = vmatprep.subr.mxu0 0.0
          %617 = vmatpush1.msra.mxu0 0.0
          %618 = vmatprep.subr.mxu0 0.0
          %619 = vmatpush1.msra.mxu0 0.0
          %620 = vmatprep.subr.mxu0 0.0
          %621 = vmatpush1.msra.mxu0 0.0
          %622 = vmatprep.subr.mxu0 0.0
          %623 = vmatpush1.msra.mxu0 0.0
          %624 = vmatprep.subr.mxu0 0.0
          %625 = vmatpush1.msra.mxu0 0.0
          %626 = vmatprep.subr.mxu0 0.0
          %627 = vmatpush1.msra.mxu0 0.0
          %628 = vmatprep.subr.mxu0 0.0
          %629 = vmatpush1.msra.mxu0 0.0
          %630 = vmatprep.subr.mxu0 0.0
          %631 = vmatpush1.msra.mxu0 0.0
          %632 = vmatprep.subr.mxu0 0.0
          %633 = vmatpush1.msra.mxu0 0.0
          %634 = vmatprep.subr.mxu0 0.0
          %635 = vmatpush1.msra.mxu0 0.0
          %636 = vmatprep.mubr.f32.mxu0 0.0
          %637 = vmatmul.mubr.f32.gmra.mrb[0].mxu0 %v436
          %v638 = vpop.f32.mrb[0].mxu0
          %v639 = vadd.f32 %v430, %v638
          %v640 = vpop.f32.mrb[0].mxu0
          %641 = vmatprep.mubr.f32.mxu0 0.0
          %642 = vmatmul.mubr.f32.gmra.mrb[0].mxu0 %v439
          %v643 = vpop.f32.mrb[0].mxu0
          %v644 = vadd.f32 %v430, %v643
          %v645 = vpop.f32.mrb[0].mxu0
          %646 = vmatprep.mubr.f32.mxu0 0.0
          %647 = vmatmul.mubr.f32.gmra.mrb[0].mxu0 %v442
          %v648 = vpop.f32.mrb[0].mxu0
          %v649 = vadd.f32 %v430, %v648
          %v650 = vpop.f32.mrb[0].mxu0
          %651 = vmatprep.mubr.f32.mxu0 0.0
          %652 = vmatmul.mubr.f32.gmra.mrb[0].mxu0 %v445
          %v653 = vpop.f32.mrb[0].mxu0
          %v654 = vadd.f32 %v430, %v653
          %v655 = vpop.f32.mrb[0].mxu0
          %656 = vmatprep.mubr.f32.mxu0 0.0
          %657 = vmatmul.mubr.f32.gmra.mrb[0].mxu0 %v448
          %v658 = vpop.f32.mrb[0].mxu0
          %v659 = vadd.f32 %v430, %v658
          %v660 = vpop.f32.mrb[0].mxu0
          %661 = vmatprep.mubr.f32.mxu0 0.0
          %662 = vmatmul.mubr.f32.gmra.mrb[0].mxu0 %v451
          %v663 = vpop.f32.mrb[0].mxu0
          %v664 = vadd.f32 %v430, %v663
          %v665 = vpop.f32.mrb[0].mxu0
          %666 = vmatprep.mubr.f32.mxu0 0.0
          %667 = vmatmul.mubr.f32.gmra.mrb[0].mxu0 %v454
          %v668 = vpop.f32.mrb[0].mxu0
          %v669 = vadd.f32 %v430, %v668
          %v670 = vpop.f32.mrb[0].mxu0
          %671 = vmatprep.mubr.f32.mxu0 0.0
          %672 = vmatmul.mubr.f32.gmra.mrb[0].mxu0 %v457
          %v673 = vpop.f32.mrb[0].mxu0
          %v674 = vadd.f32 %v430, %v673
          %v675 = vpop.f32.mrb[0].mxu0
          %676 = vdwg.mxu0
          %v677 = vpack.c.bf16 %v532, %v526
          %v678 = vpack.c.bf16 %v544, %v538
          %v679 = vpack.c.bf16 %v556, %v550
          %v680 = vpack.c.bf16 %v568, %v562
          %681 = vst [vmem:[#allocation2] sm:$0xff] %v677
          %682 = vst [vmem:[#allocation2 + $0x8] sm:$0xff] %v678
          %683 = vst [vmem:[#allocation2 + $0x10] sm:$0xff] %v679
          %684 = vst [vmem:[#allocation2 + $0x18] sm:$0xff] %v680
          %v685 = vpack.c.bf16 %v534, %v528
          %v686 = vpack.c.bf16 %v644, %v639
          %v687 = vpack.c.bf16 %v546, %v540
          %v688 = vpack.c.bf16 %v654, %v649
          %v689 = vpack.c.bf16 %v558, %v552
          %v690 = vpack.c.bf16 %v664, %v659
          %v691 = vpack.c.bf16 %v570, %v564
          %v692 = vpack.c.bf16 %v674, %v669
          %693 = vst [vmem:[#allocation3] sm:$0xff] %v685
          %694 = vst [vmem:[#allocation3 + $0x8] sm:$0xff] %v686
          %695 = vst [vmem:[#allocation3 + $0x10] sm:$0xff] %v687
          %696 = vst [vmem:[#allocation3 + $0x18] sm:$0xff] %v688
          %697 = vst [vmem:[#allocation3 + $0x20] sm:$0xff] %v689
          %698 = vst [vmem:[#allocation3 + $0x28] sm:$0xff] %v690
          %699 = vst [vmem:[#allocation3 + $0x30] sm:$0xff] %v691
          %700 = vst [vmem:[#allocation3 + $0x38] sm:$0xff] %v692
          %vm701 = vcmask 24576
          %702 = vst.msk [vmem:[#allocation4] sm:$0x1] %vm701, -1e+30
          %703 = vst [vmem:[#allocation5] sm:$0xff] 0.0
          %704 = vst [vmem:[#allocation5 + $0x8] sm:$0xff] 0.0
          %705 = vst [vmem:[#allocation5 + $0x10] sm:$0xff] 0.0
          %706 = vst [vmem:[#allocation5 + $0x18] sm:$0xff] 0.0
          %707 = vst [vmem:[#allocation5 + $0x20] sm:$0xff] 0.0
          %708 = vst [vmem:[#allocation5 + $0x28] sm:$0xff] 0.0
          %709 = vst [vmem:[#allocation5 + $0x30] sm:$0xff] 0.0
          %710 = vst [vmem:[#allocation5 + $0x38] sm:$0xff] 0.0
          %711 = vst [vmem:[#allocation6] sm:$0xff] 0.0
          %712 = vst [vmem:[#allocation6 + $0x8] sm:$0xff] 0.0
          %713 = vst [vmem:[#allocation6 + $0x10] sm:$0xff] 0.0
          %714 = vst [vmem:[#allocation6 + $0x18] sm:$0xff] 0.0
          %715 = vst [vmem:[#allocation6 + $0x20] sm:$0xff] 0.0
          %716 = vst [vmem:[#allocation6 + $0x28] sm:$0xff] 0.0
          %717 = vst [vmem:[#allocation6 + $0x30] sm:$0xff] 0.0
          %718 = vst [vmem:[#allocation6 + $0x38] sm:$0xff] 0.0
        $region64: #{tpu_custom_call.1} parent=59 // pred_fallthru
          _
        %v719 = vld [vmem:[%s384] sm:$0xf]
        %v720 = vld [vmem:[%s384 + $0x4] sm:$0xf]
        %v721 = vld [vmem:[%s384 + $0x8] sm:$0xf]
        %v722 = vld [vmem:[%s384 + $0xc] sm:$0xf]
        %v723 = vld [vmem:[%s384 + $0x10] sm:$0xf]
        %v724 = vld [vmem:[%s384 + $0x14] sm:$0xf]
        %v725 = vld [vmem:[%s384 + $0x18] sm:$0xf]
        %v726 = vld [vmem:[%s384 + $0x1c] sm:$0xf]
        %v727 = vld [vmem:[%s384 + $0x20] sm:$0xf]
        %v728 = vld [vmem:[%s384 + $0x24] sm:$0xf]
        %v729 = vld [vmem:[%s384 + $0x28] sm:$0xf]
        %v730 = vld [vmem:[%s384 + $0x2c] sm:$0xf]
        %v731 = vld [vmem:[%s384 + $0x30] sm:$0xf]
        %v732 = vld [vmem:[%s384 + $0x34] sm:$0xf]
        %v733 = vld [vmem:[%s384 + $0x38] sm:$0xf]
        %v734 = vld [vmem:[%s384 + $0x3c] sm:$0xf]
        %v735 = vld [vmem:[%s390] sm:$0xf]
        %v736 = vld [vmem:[%s390 + $0x4] sm:$0xf]
        %v737 = vld [vmem:[%s390 + $0x8] sm:$0xf]
        %v738 = vld [vmem:[%s390 + $0xc] sm:$0xf]
        %v739 = vld [vmem:[%s390 + $0x10] sm:$0xf]
        %v740 = vld [vmem:[%s390 + $0x14] sm:$0xf]
        %v741 = vld [vmem:[%s390 + $0x18] sm:$0xf]
        %v742 = vld [vmem:[%s390 + $0x1c] sm:$0xf]
        %v743 = vld [vmem:[%s390 + $0x20] sm:$0xf]
        %v744 = vld [vmem:[%s390 + $0x24] sm:$0xf]
        %v745 = vld [vmem:[%s390 + $0x28] sm:$0xf]
        %v746 = vld [vmem:[%s390 + $0x2c] sm:$0xf]
        %v747 = vld [vmem:[%s390 + $0x30] sm:$0xf]
        %v748 = vld [vmem:[%s390 + $0x34] sm:$0xf]
        %v749 = vld [vmem:[%s390 + $0x38] sm:$0xf]
        %v750 = vld [vmem:[%s390 + $0x3c] sm:$0xf]
        %v751 = vld [vmem:[#allocation3] sm:$0xff]
        %v752 = vld [vmem:[#allocation3 + $0x8] sm:$0xff]
        %v753 = vld [vmem:[#allocation3 + $0x10] sm:$0xff]
        %v754 = vld [vmem:[#allocation3 + $0x18] sm:$0xff]
        %v755 = vld [vmem:[#allocation3 + $0x20] sm:$0xff]
        %v756 = vld [vmem:[#allocation3 + $0x28] sm:$0xff]
        %v757 = vld [vmem:[#allocation3 + $0x30] sm:$0xff]
        %v758 = vld [vmem:[#allocation3 + $0x38] sm:$0xff]
        %v775 = vunpack.c.l.b16 %v719
        %v776 = vunpack.c.l.b16 %v720
        %v777 = vunpack.c.l.b16 %v721
        %v778 = vunpack.c.l.b16 %v722
        %v779 = vunpack.c.l.b16 %v723
        %v780 = vunpack.c.l.b16 %v724
        %v781 = vunpack.c.l.b16 %v725
        %v782 = vunpack.c.l.b16 %v726
        %v783 = vunpack.c.l.b16 %v727
        %v784 = vunpack.c.l.b16 %v728
        %v785 = vunpack.c.l.b16 %v729
        %v786 = vunpack.c.l.b16 %v730
        %v787 = vunpack.c.l.b16 %v731
        %v788 = vunpack.c.l.b16 %v732
        %v789 = vunpack.c.l.b16 %v733
        %v790 = vunpack.c.l.b16 %v734
        %v791 = vpack.c.b16 %v776, %v775
        %v792 = vpack.c.b16 %v778, %v777
        %v793 = vpack.c.b16 %v780, %v779
        %v794 = vpack.c.b16 %v782, %v781
        %v795 = vpack.c.b16 %v784, %v783
        %v796 = vpack.c.b16 %v786, %v785
        %v797 = vpack.c.b16 %v788, %v787
        %v798 = vpack.c.b16 %v790, %v789
        %vm799 = vcmask 523264
        %v801 = vsel %vm799, %v791, 0
        %v804 = vsel %vm799, %v792, 0
        %v807 = vsel %vm799, %v793, 0
        %v810 = vsel %vm799, %v794, 0
        %v813 = vsel %vm799, %v795, 0
        %v816 = vsel %vm799, %v796, 0
        %v819 = vsel %vm799, %v797, 0
        %v822 = vsel %vm799, %v798, 0
        %824 = vmatprep.subr.bf16.mxu0 %v752
        %825 = vmatpush1.bf16.msra.mxu0 %v751
        %826 = vmatprep.subr.bf16.mxu0 %v754
        %827 = vmatpush1.bf16.msra.mxu0 %v753
        %828 = vmatprep.subr.bf16.mxu0 %v756
        %829 = vmatpush1.bf16.msra.mxu0 %v755
        %830 = vmatprep.subr.bf16.mxu0 %v758
        %831 = vmatpush1.bf16.msra.mxu0 %v757
        %832 = vmatprep.subr.bf16.mxu0 0
        %833 = vmatpush1.bf16.msra.mxu0 0
        %834 = vmatprep.subr.bf16.mxu0 0
        %835 = vmatpush1.bf16.msra.mxu0 0
        %836 = vmatprep.subr.bf16.mxu0 0
        %837 = vmatpush1.bf16.msra.mxu0 0
        %838 = vmatprep.subr.bf16.mxu0 0
        %839 = vmatpush1.bf16.msra.mxu0 0
        %840 = vmatprep.subr.bf16.mxu0 0
        %841 = vmatpush1.bf16.msra.mxu0 0
        %842 = vmatprep.subr.bf16.mxu0 0
        %843 = vmatpush1.bf16.msra.mxu0 0
        %844 = vmatprep.subr.bf16.mxu0 0
        %845 = vmatpush1.bf16.msra.mxu0 0
        %846 = vmatprep.subr.bf16.mxu0 0
        %847 = vmatpush1.bf16.msra.mxu0 0
        %848 = vmatprep.subr.bf16.mxu0 0
        %849 = vmatpush1.bf16.msra.mxu0 0
        %850 = vmatprep.subr.bf16.mxu0 0
        %851 = vmatpush1.bf16.msra.mxu0 0
        %852 = vmatprep.subr.bf16.mxu0 0
        %853 = vmatpush1.bf16.msra.mxu0 0
        %854 = vmatprep.subr.bf16.mxu0 0
        %855 = vmatpush1.bf16.msra.mxu0 0
        %856 = vmatprep.mubr.bf16.mxu0 0
        %857 = vmatmul.mubr.bf16.gmra.mrb[0].mxu0 %v801
        %v858 = vpop.f32.mrb[0].mxu0
        %v859 = vadd.f32 0.0, %v858
        %v860 = vpop.f32.mrb[0].mxu0
        %v861 = vadd.f32 0.0, %v860
        %v862 = vpop.f32.mrb[0].mxu0
        %v863 = vadd.f32 0.0, %v862
        %v864 = vpop.f32.mrb[0].mxu0
        %v865 = vadd.f32 0.0, %v864
        %866 = vmatprep.mubr.bf16.mxu0 0
        %867 = vmatmul.mubr.bf16.gmra.mrb[0].mxu0 %v804
        %v868 = vpop.f32.mrb[0].mxu0
        %v869 = vadd.f32 0.0, %v868
        %v870 = vpop.f32.mrb[0].mxu0
        %v871 = vadd.f32 0.0, %v870
        %v872 = vpop.f32.mrb[0].mxu0
        %v873 = vadd.f32 0.0, %v872
        %v874 = vpop.f32.mrb[0].mxu0
        %v875 = vadd.f32 0.0, %v874
        %876 = vmatprep.mubr.bf16.mxu0 0
        %877 = vmatmul.mubr.bf16.gmra.mrb[0].mxu0 %v807
        %v878 = vpop.f32.mrb[0].mxu0
        %v879 = vadd.f32 0.0, %v878
        %v880 = vpop.f32.mrb[0].mxu0
        %v881 = vadd.f32 0.0, %v880
        %v882 = vpop.f32.mrb[0].mxu0
        %v883 = vadd.f32 0.0, %v882
        %v884 = vpop.f32.mrb[0].mxu0
        %v885 = vadd.f32 0.0, %v884
        %886 = vmatprep.mubr.bf16.mxu0 0
        %887 = vmatmul.mubr.bf16.gmra.mrb[0].mxu0 %v810
        %v888 = vpop.f32.mrb[0].mxu0
        %v889 = vadd.f32 0.0, %v888
        %v890 = vpop.f32.mrb[0].mxu0
        %v891 = vadd.f32 0.0, %v890
        %v892 = vpop.f32.mrb[0].mxu0
        %v893 = vadd.f32 0.0, %v892
        %v894 = vpop.f32.mrb[0].mxu0
        %v895 = vadd.f32 0.0, %v894
        %896 = vmatprep.mubr.bf16.mxu0 0
        %897 = vmatmul.mubr.bf16.gmra.mrb[0].mxu0 %v813
        %v898 = vpop.f32.mrb[0].mxu0
        %v899 = vadd.f32 0.0, %v898
        %v900 = vpop.f32.mrb[0].mxu0
        %v901 = vadd.f32 0.0, %v900
        %v902 = vpop.f32.mrb[0].mxu0
        %v903 = vadd.f32 0.0, %v902
        %v904 = vpop.f32.mrb[0].mxu0
        %v905 = vadd.f32 0.0, %v904
        %906 = vmatprep.mubr.bf16.mxu0 0
        %907 = vmatmul.mubr.bf16.gmra.mrb[0].mxu0 %v816
        %v908 = vpop.f32.mrb[0].mxu0
        %v909 = vadd.f32 0.0, %v908
        %v910 = vpop.f32.mrb[0].mxu0
        %v911 = vadd.f32 0.0, %v910
        %v912 = vpop.f32.mrb[0].mxu0
        %v913 = vadd.f32 0.0, %v912
        %v914 = vpop.f32.mrb[0].mxu0
        %v915 = vadd.f32 0.0, %v914
        %916 = vmatprep.mubr.bf16.mxu0 0
        %917 = vmatmul.mubr.bf16.gmra.mrb[0].mxu0 %v819
        %v918 = vpop.f32.mrb[0].mxu0
        %v919 = vadd.f32 0.0, %v918
        %v920 = vpop.f32.mrb[0].mxu0
        %v921 = vadd.f32 0.0, %v920
        %v922 = vpop.f32.mrb[0].mxu0
        %v923 = vadd.f32 0.0, %v922
        %v924 = vpop.f32.mrb[0].mxu0
        %v925 = vadd.f32 0.0, %v924
        %926 = vmatprep.mubr.bf16.mxu0 0
        %927 = vmatmul.mubr.bf16.gmra.mrb[0].mxu0 %v822
        %v928 = vpop.f32.mrb[0].mxu0
        %v929 = vadd.f32 0.0, %v928
        %v930 = vpop.f32.mrb[0].mxu0
        %v931 = vadd.f32 0.0, %v930
        %v932 = vpop.f32.mrb[0].mxu0
        %v933 = vadd.f32 0.0, %v932
        %v934 = vpop.f32.mrb[0].mxu0
        %v935 = vadd.f32 0.0, %v934
        %936 = vdwg.mxu0
        %v937 = vld [vmem:[#allocation2] sm:$0xff]
        %v938 = vld [vmem:[#allocation2 + $0x8] sm:$0xff]
        %v939 = vld [vmem:[#allocation2 + $0x10] sm:$0xff]
        %v940 = vld [vmem:[#allocation2 + $0x18] sm:$0xff]
        %v957 = vunpack.c.l.b16 %v735
        %v958 = vunpack.c.l.b16 %v736
        %v959 = vunpack.c.l.b16 %v737
        %v960 = vunpack.c.l.b16 %v738
        %v961 = vunpack.c.l.b16 %v739
        %v962 = vunpack.c.l.b16 %v740
        %v963 = vunpack.c.l.b16 %v741
        %v964 = vunpack.c.l.b16 %v742
        %v965 = vunpack.c.l.b16 %v743
        %v966 = vunpack.c.l.b16 %v744
        %v967 = vunpack.c.l.b16 %v745
        %v968 = vunpack.c.l.b16 %v746
        %v969 = vunpack.c.l.b16 %v747
        %v970 = vunpack.c.l.b16 %v748
        %v971 = vunpack.c.l.b16 %v749
        %v972 = vunpack.c.l.b16 %v750
        %v973 = vpack.c.b16 %v958, %v957
        %v974 = vpack.c.b16 %v960, %v959
        %v975 = vpack.c.b16 %v962, %v961
        %v976 = vpack.c.b16 %v964, %v963
        %v977 = vpack.c.b16 %v966, %v965
        %v978 = vpack.c.b16 %v968, %v967
        %v979 = vpack.c.b16 %v970, %v969
        %v980 = vpack.c.b16 %v972, %v971
        %v982 = vsel %vm799, %v973, 0
        %v985 = vsel %vm799, %v974, 0
        %v988 = vsel %vm799, %v975, 0
        %v991 = vsel %vm799, %v976, 0
        %v994 = vsel %vm799, %v977, 0
        %v997 = vsel %vm799, %v978, 0
        %v1000 = vsel %vm799, %v979, 0
        %v1003 = vsel %vm799, %v980, 0
        %1005 = vmatprep.subr.bf16.mxu0 0
        %1006 = vmatpush1.bf16.msra.mxu0 %v937
        %1007 = vmatprep.subr.bf16.mxu0 0
        %1008 = vmatpush1.bf16.msra.mxu0 %v938
        %1009 = vmatprep.subr.bf16.mxu0 0
        %1010 = vmatpush1.bf16.msra.mxu0 %v939
        %1011 = vmatprep.subr.bf16.mxu0 0
        %1012 = vmatpush1.bf16.msra.mxu0 %v940
        %1013 = vmatprep.subr.bf16.mxu0 0
        %1014 = vmatpush1.bf16.msra.mxu0 0
        %1015 = vmatprep.subr.bf16.mxu0 0
        %1016 = vmatpush1.bf16.msra.mxu0 0
        %1017 = vmatprep.subr.bf16.mxu0 0
        %1018 = vmatpush1.bf16.msra.mxu0 0
        %1019 = vmatprep.subr.bf16.mxu0 0
        %1020 = vmatpush1.bf16.msra.mxu0 0
        %1021 = vmatprep.subr.bf16.mxu0 0
        %1022 = vmatpush1.bf16.msra.mxu0 0
        %1023 = vmatprep.subr.bf16.mxu0 0
        %1024 = vmatpush1.bf16.msra.mxu0 0
        %1025 = vmatprep.subr.bf16.mxu0 0
        %1026 = vmatpush1.bf16.msra.mxu0 0
        %1027 = vmatprep.subr.bf16.mxu0 0
        %1028 = vmatpush1.bf16.msra.mxu0 0
        %1029 = vmatprep.subr.bf16.mxu0 0
        %1030 = vmatpush1.bf16.msra.mxu0 0
        %1031 = vmatprep.subr.bf16.mxu0 0
        %1032 = vmatpush1.bf16.msra.mxu0 0
        %1033 = vmatprep.subr.bf16.mxu0 0
        %1034 = vmatpush1.bf16.msra.mxu0 0
        %1035 = vmatprep.subr.bf16.mxu0 0
        %1036 = vmatpush1.bf16.msra.mxu0 0
        %1037 = vmatprep.mubr.bf16.mxu0 0
        %1038 = vmatmul.mubr.bf16.gmra.mrb[0].mxu0 %v982
        %v1039 = vpop.f32.mrb[0].mxu0
        %v1040 = vadd.f32 0.0, %v1039
        %v1041 = vpop.f32.mrb[0].mxu0
        %v1042 = vpop.f32.mrb[0].mxu0
        %v1043 = vadd.f32 0.0, %v1042
        %v1044 = vpop.f32.mrb[0].mxu0
        %1045 = vmatprep.mubr.bf16.mxu0 0
        %1046 = vmatmul.mubr.bf16.gmra.mrb[0].mxu0 %v985
        %v1047 = vpop.f32.mrb[0].mxu0
        %v1048 = vadd.f32 0.0, %v1047
        %v1049 = vpop.f32.mrb[0].mxu0
        %v1050 = vpop.f32.mrb[0].mxu0
        %v1051 = vadd.f32 0.0, %v1050
        %v1052 = vpop.f32.mrb[0].mxu0
        %1053 = vmatprep.mubr.bf16.mxu0 0
        %1054 = vmatmul.mubr.bf16.gmra.mrb[0].mxu0 %v988
        %v1055 = vpop.f32.mrb[0].mxu0
        %v1056 = vadd.f32 0.0, %v1055
        %v1057 = vpop.f32.mrb[0].mxu0
        %v1058 = vpop.f32.mrb[0].mxu0
        %v1059 = vadd.f32 0.0, %v1058
        %v1060 = vpop.f32.mrb[0].mxu0
        %1061 = vmatprep.mubr.bf16.mxu0 0
        %1062 = vmatmul.mubr.bf16.gmra.mrb[0].mxu0 %v991
        %v1063 = vpop.f32.mrb[0].mxu0
        %v1064 = vadd.f32 0.0, %v1063
        %v1065 = vpop.f32.mrb[0].mxu0
        %v1066 = vpop.f32.mrb[0].mxu0
        %v1067 = vadd.f32 0.0, %v1066
        %v1068 = vpop.f32.mrb[0].mxu0
        %1069 = vmatprep.mubr.bf16.mxu0 0
        %1070 = vmatmul.mubr.bf16.gmra.mrb[0].mxu0 %v994
        %v1071 = vpop.f32.mrb[0].mxu0
        %v1072 = vadd.f32 0.0, %v1071
        %v1073 = vpop.f32.mrb[0].mxu0
        %v1074 = vpop.f32.mrb[0].mxu0
        %v1075 = vadd.f32 0.0, %v1074
        %v1076 = vpop.f32.mrb[0].mxu0
        %1077 = vmatprep.mubr.bf16.mxu0 0
        %1078 = vmatmul.mubr.bf16.gmra.mrb[0].mxu0 %v997
        %v1079 = vpop.f32.mrb[0].mxu0
        %v1080 = vadd.f32 0.0, %v1079
        %v1081 = vpop.f32.mrb[0].mxu0
        %v1082 = vpop.f32.mrb[0].mxu0
        %v1083 = vadd.f32 0.0, %v1082
        %v1084 = vpop.f32.mrb[0].mxu0
        %1085 = vmatprep.mubr.bf16.mxu0 0
        %1086 = vmatmul.mubr.bf16.gmra.mrb[0].mxu0 %v1000
        %v1087 = vpop.f32.mrb[0].mxu0
        %v1088 = vadd.f32 0.0, %v1087
        %v1089 = vpop.f32.mrb[0].mxu0
        %v1090 = vpop.f32.mrb[0].mxu0
        %v1091 = vadd.f32 0.0, %v1090
        %v1092 = vpop.f32.mrb[0].mxu0
        %1093 = vmatprep.mubr.bf16.mxu0 0
        %1094 = vmatmul.mubr.bf16.gmra.mrb[0].mxu0 %v1003
        %v1095 = vpop.f32.mrb[0].mxu0
        %v1096 = vadd.f32 0.0, %v1095
        %v1097 = vpop.f32.mrb[0].mxu0
        %v1098 = vpop.f32.mrb[0].mxu0
        %v1099 = vadd.f32 0.0, %v1098
        %v1100 = vpop.f32.mrb[0].mxu0
        %1101 = vdwg.mxu0
        %v1102 = vld [vmem:[%s378] sm:$0xff]
        %v1103 = vld [vmem:[%s378 + $0x8] sm:$0xff]
        %v1104 = vld [vmem:[%s378 + $0x10] sm:$0xff]
        %v1105 = vld [vmem:[%s378 + $0x18] sm:$0xff]
        %v1106 = vld [vmem:[%s378 + $0x20] sm:$0xff]
        %v1107 = vld [vmem:[%s378 + $0x28] sm:$0xff]
        %v1108 = vld [vmem:[%s378 + $0x30] sm:$0xff]
        %v1109 = vld [vmem:[%s378 + $0x38] sm:$0xff]
        %v1110 = vld [vmem:[%s378 + $0x40] sm:$0xff]
        %v1111 = vld [vmem:[%s378 + $0x48] sm:$0xff]
        %v1112 = vld [vmem:[%s378 + $0x50] sm:$0xff]
        %v1113 = vld [vmem:[%s378 + $0x58] sm:$0xff]
        %v1114 = vld [vmem:[%s378 + $0x60] sm:$0xff]
        %v1115 = vld [vmem:[%s378 + $0x68] sm:$0xff]
        %v1116 = vld [vmem:[%s378 + $0x70] sm:$0xff]
        %v1117 = vld [vmem:[%s378 + $0x78] sm:$0xff]
        %v1118 = vld [vmem:[%s4] sm:$0xff]
        %v1119 = vld [vmem:[%s4 + $0x8] sm:$0xff]
        %v1120 = vld [vmem:[%s4 + $0x10] sm:$0xff]
        %v1121 = vld [vmem:[%s4 + $0x18] sm:$0xff]
        %v1122 = vld [vmem:[%s5] sm:$0x1]
        %v1124 = vlaneseq
        %v1125 = vshrl.u32 %v1124, 7
        %v1126 = vsub.s32 0, %v1125
        %v1127 = vrot.slane %v1122, %v1126
        %vm1129 = vcmask 261120
        %v1131 = vsel %vm1129, %v1102, 0
        %v1134 = vsel %vm1129, %v1103, 0
        %v1137 = vsel %vm1129, %v1104, 0
        %v1140 = vsel %vm1129, %v1105, 0
        %v1143 = vsel %vm1129, %v1106, 0
        %v1146 = vsel %vm1129, %v1107, 0
        %v1149 = vsel %vm1129, %v1108, 0
        %v1152 = vsel %vm1129, %v1109, 0
        %v1155 = vsel %vm1129, %v1110, 0
        %v1158 = vsel %vm1129, %v1111, 0
        %v1161 = vsel %vm1129, %v1112, 0
        %v1164 = vsel %vm1129, %v1113, 0
        %v1167 = vsel %vm1129, %v1114, 0
        %v1170 = vsel %vm1129, %v1115, 0
        %v1173 = vsel %vm1129, %v1116, 0
        %v1176 = vsel %vm1129, %v1117, 0
        %1178 = vmatprep.subr.mxu0 0.0
        %1179 = vmatpush1.msra.mxu0 %v1118
        %1180 = vmatprep.subr.mxu0 0.0
        %1181 = vmatpush1.msra.mxu0 %v1119
        %1182 = vmatprep.subr.mxu0 0.0
        %1183 = vmatpush1.msra.mxu0 %v1120
        %1184 = vmatprep.subr.mxu0 0.0
        %1185 = vmatpush1.msra.mxu0 %v1121
        %1186 = vmatprep.subr.mxu0 0.0
        %1187 = vmatpush1.msra.mxu0 0.0
        %1188 = vmatprep.subr.mxu0 0.0
        %1189 = vmatpush1.msra.mxu0 0.0
        %1190 = vmatprep.subr.mxu0 0.0
        %1191 = vmatpush1.msra.mxu0 0.0
        %1192 = vmatprep.subr.mxu0 0.0
        %1193 = vmatpush1.msra.mxu0 0.0
        %1194 = vmatprep.subr.mxu0 0.0
        %1195 = vmatpush1.msra.mxu0 0.0
        %1196 = vmatprep.subr.mxu0 0.0
        %1197 = vmatpush1.msra.mxu0 0.0
        %1198 = vmatprep.subr.mxu0 0.0
        %1199 = vmatpush1.msra.mxu0 0.0
        %1200 = vmatprep.subr.mxu0 0.0
        %1201 = vmatpush1.msra.mxu0 0.0
        %1202 = vmatprep.subr.mxu0 0.0
        %1203 = vmatpush1.msra.mxu0 0.0
        %1204 = vmatprep.subr.mxu0 0.0
        %1205 = vmatpush1.msra.mxu0 0.0
        %1206 = vmatprep.subr.mxu0 0.0
        %1207 = vmatpush1.msra.mxu0 0.0
        %1208 = vmatprep.subr.mxu0 0.0
        %1209 = vmatpush1.msra.mxu0 0.0
        %1210 = vmatprep.subr.mxu0 0.0
        %1211 = vmatpush1.msra.mxu0 0.0
        %1212 = vmatprep.subr.mxu0 0.0
        %1213 = vmatpush1.msra.mxu0 0.0
        %1214 = vmatprep.subr.mxu0 0.0
        %1215 = vmatpush1.msra.mxu0 0.0
        %1216 = vmatprep.subr.mxu0 0.0
        %1217 = vmatpush1.msra.mxu0 0.0
        %1218 = vmatprep.subr.mxu0 0.0
        %1219 = vmatpush1.msra.mxu0 0.0
        %1220 = vmatprep.subr.mxu0 0.0
        %1221 = vmatpush1.msra.mxu0 0.0
        %1222 = vmatprep.subr.mxu0 0.0
        %1223 = vmatpush1.msra.mxu0 0.0
        %1224 = vmatprep.subr.mxu0 0.0
        %1225 = vmatpush1.msra.mxu0 0.0
        %1226 = vmatprep.subr.mxu0 0.0
        %1227 = vmatpush1.msra.mxu0 0.0
        %1228 = vmatprep.subr.mxu0 0.0
        %1229 = vmatpush1.msra.mxu0 0.0
        %1230 = vmatprep.subr.mxu0 0.0
        %1231 = vmatpush1.msra.mxu0 0.0
        %1232 = vmatprep.subr.mxu0 0.0
        %1233 = vmatpush1.msra.mxu0 0.0
        %1234 = vmatprep.subr.mxu0 0.0
        %1235 = vmatpush1.msra.mxu0 0.0
        %1236 = vmatprep.subr.mxu0 0.0
        %1237 = vmatpush1.msra.mxu0 0.0
        %1238 = vmatprep.subr.mxu0 0.0
        %1239 = vmatpush1.msra.mxu0 0.0
        %1240 = vmatprep.subr.mxu0 0.0
        %1241 = vmatpush1.msra.mxu0 0.0
        %1242 = vmatprep.mubr.f32.mxu0 0.0
        %1243 = vmatmul.mubr.f32.gmra.mrb[0].mxu0 %v1131
        %v1244 = vpop.f32.mrb[0].mxu0
        %v1245 = vadd.f32 %v1127, %v1244
        %v1246 = vpop.f32.mrb[0].mxu0
        %1247 = vmatprep.mubr.f32.mxu0 0.0
        %1248 = vmatmul.mubr.f32.gmra.mrb[0].mxu0 %v1134
        %v1249 = vpop.f32.mrb[0].mxu0
        %v1250 = vadd.f32 %v1127, %v1249
        %v1251 = vpop.f32.mrb[0].mxu0
        %1252 = vmatprep.mubr.f32.mxu0 0.0
        %1253 = vmatmul.mubr.f32.gmra.mrb[0].mxu0 %v1137
        %v1254 = vpop.f32.mrb[0].mxu0
        %v1255 = vadd.f32 %v1127, %v1254
        %v1256 = vpop.f32.mrb[0].mxu0
        %1257 = vmatprep.mubr.f32.mxu0 0.0
        %1258 = vmatmul.mubr.f32.gmra.mrb[0].mxu0 %v1140
        %v1259 = vpop.f32.mrb[0].mxu0
        %v1260 = vadd.f32 %v1127, %v1259
        %v1261 = vpop.f32.mrb[0].mxu0
        %1262 = vmatprep.mubr.f32.mxu0 0.0
        %1263 = vmatmul.mubr.f32.gmra.mrb[0].mxu0 %v1143
        %v1264 = vpop.f32.mrb[0].mxu0
        %v1265 = vadd.f32 %v1127, %v1264
        %v1266 = vpop.f32.mrb[0].mxu0
        %1267 = vmatprep.mubr.f32.mxu0 0.0
        %1268 = vmatmul.mubr.f32.gmra.mrb[0].mxu0 %v1146
        %v1269 = vpop.f32.mrb[0].mxu0
        %v1270 = vadd.f32 %v1127, %v1269
        %v1271 = vpop.f32.mrb[0].mxu0
        %1272 = vmatprep.mubr.f32.mxu0 0.0
        %1273 = vmatmul.mubr.f32.gmra.mrb[0].mxu0 %v1149
        %v1274 = vpop.f32.mrb[0].mxu0
        %v1275 = vadd.f32 %v1127, %v1274
        %v1276 = vpop.f32.mrb[0].mxu0
        %1277 = vmatprep.mubr.f32.mxu0 0.0
        %1278 = vmatmul.mubr.f32.gmra.mrb[0].mxu0 %v1152
        %v1279 = vpop.f32.mrb[0].mxu0
        %v1280 = vadd.f32 %v1127, %v1279
        %v1281 = vpop.f32.mrb[0].mxu0
        %1282 = vmatprep.mubr.f32.mxu0 0.0
        %1283 = vmatmul.mubr.f32.gmra.mrb[0].mxu0 %v1155
        %v1284 = vpop.f32.mrb[0].mxu0
        %v1285 = vadd.f32 %v1127, %v1284
        %v1286 = vpop.f32.mrb[0].mxu0
        %1287 = vmatprep.mubr.f32.mxu0 0.0
        %1288 = vmatmul.mubr.f32.gmra.mrb[0].mxu0 %v1158
        %v1289 = vpop.f32.mrb[0].mxu0
        %v1290 = vadd.f32 %v1127, %v1289
        %v1291 = vpop.f32.mrb[0].mxu0
        %1292 = vmatprep.mubr.f32.mxu0 0.0
        %1293 = vmatmul.mubr.f32.gmra.mrb[0].mxu0 %v1161
        %v1294 = vpop.f32.mrb[0].mxu0
        %v1295 = vadd.f32 %v1127, %v1294
        %v1296 = vpop.f32.mrb[0].mxu0
        %1297 = vmatprep.mubr.f32.mxu0 0.0
        %1298 = vmatmul.mubr.f32.gmra.mrb[0].mxu0 %v1164
        %v1299 = vpop.f32.mrb[0].mxu0
        %v1300 = vadd.f32 %v1127, %v1299
        %v1301 = vpop.f32.mrb[0].mxu0
        %1302 = vmatprep.mubr.f32.mxu0 0.0
        %1303 = vmatmul.mubr.f32.gmra.mrb[0].mxu0 %v1167
        %v1304 = vpop.f32.mrb[0].mxu0
        %v1305 = vadd.f32 %v1127, %v1304
        %v1306 = vpop.f32.mrb[0].mxu0
        %1307 = vmatprep.mubr.f32.mxu0 0.0
        %1308 = vmatmul.mubr.f32.gmra.mrb[0].mxu0 %v1170
        %v1309 = vpop.f32.mrb[0].mxu0
        %v1310 = vadd.f32 %v1127, %v1309
        %v1311 = vpop.f32.mrb[0].mxu0
        %1312 = vmatprep.mubr.f32.mxu0 0.0
        %1313 = vmatmul.mubr.f32.gmra.mrb[0].mxu0 %v1173
        %v1314 = vpop.f32.mrb[0].mxu0
        %v1315 = vadd.f32 %v1127, %v1314
        %v1316 = vpop.f32.mrb[0].mxu0
        %1317 = vmatprep.mubr.f32.mxu0 0.0
        %1318 = vmatmul.mubr.f32.gmra.mrb[0].mxu0 %v1176
        %v1319 = vpop.f32.mrb[0].mxu0
        %v1320 = vadd.f32 %v1127, %v1319
        %v1321 = vpop.f32.mrb[0].mxu0
        %1322 = vdwg.mxu0
        %v1323 = vmul.f32 %v859, %v1040
        %v1324 = vmul.f32 %v863, %v1043
        %v1325 = vmul.f32 %v869, %v1048
        %v1326 = vmul.f32 %v873, %v1051
        %v1327 = vmul.f32 %v879, %v1056
        %v1328 = vmul.f32 %v883, %v1059
        %v1329 = vmul.f32 %v889, %v1064
        %v1330 = vmul.f32 %v893, %v1067
        %v1331 = vmul.f32 %v899, %v1072
        %v1332 = vmul.f32 %v903, %v1075
        %v1333 = vmul.f32 %v909, %v1080
        %v1334 = vmul.f32 %v913, %v1083
        %v1335 = vmul.f32 %v919, %v1088
        %v1336 = vmul.f32 %v923, %v1091
        %v1337 = vmul.f32 %v929, %v1096
        %v1338 = vmul.f32 %v933, %v1099
        %v1339 = vmul.f32 %v1323, %v1245
        %v1340 = vmul.f32 %v1324, %v1250
        %v1341 = vmul.f32 %v1325, %v1255
        %v1342 = vmul.f32 %v1326, %v1260
        %v1343 = vmul.f32 %v1327, %v1265
        %v1344 = vmul.f32 %v1328, %v1270
        %v1345 = vmul.f32 %v1329, %v1275
        %v1346 = vmul.f32 %v1330, %v1280
        %v1347 = vmul.f32 %v1331, %v1285
        %v1348 = vmul.f32 %v1332, %v1290
        %v1349 = vmul.f32 %v1333, %v1295
        %v1350 = vmul.f32 %v1334, %v1300
        %v1351 = vmul.f32 %v1335, %v1305
        %v1352 = vmul.f32 %v1336, %v1310
        %v1353 = vmul.f32 %v1337, %v1315
        %v1354 = vmul.f32 %v1338, %v1320
        %v1355 = vld [vmem:[%s9] sm:$0xff]
        %v1356 = vld [vmem:[%s9 + $0x8] sm:$0xff]
        %v1357 = vld [vmem:[%s9 + $0x10] sm:$0xff]
        %v1358 = vld [vmem:[%s9 + $0x18] sm:$0xff]
        %v1359 = vld [vmem:[%s9 + $0x20] sm:$0xff]
        %v1360 = vld [vmem:[%s9 + $0x28] sm:$0xff]
        %v1361 = vld [vmem:[%s9 + $0x30] sm:$0xff]
        %v1362 = vld [vmem:[%s9 + $0x38] sm:$0xff]
        %v1363 = vld [vmem:[%s9 + $0x40] sm:$0xff]
        %v1364 = vld [vmem:[%s9 + $0x48] sm:$0xff]
        %v1365 = vld [vmem:[%s9 + $0x50] sm:$0xff]
        %v1366 = vld [vmem:[%s9 + $0x58] sm:$0xff]
        %v1367 = vld [vmem:[%s9 + $0x60] sm:$0xff]
        %v1368 = vld [vmem:[%s9 + $0x68] sm:$0xff]
        %v1369 = vld [vmem:[%s9 + $0x70] sm:$0xff]
        %v1370 = vld [vmem:[%s9 + $0x78] sm:$0xff]
        %1371 = vmatprep.subr.mxu0 0.0
        %1372 = vmatpush1.msra.mxu0 %v1355
        %1373 = vmatprep.subr.mxu0 0.0
        %1374 = vmatpush1.msra.mxu0 %v1356
        %1375 = vmatprep.subr.mxu0 0.0
        %1376 = vmatpush1.msra.mxu0 %v1357
        %1377 = vmatprep.subr.mxu0 0.0
        %1378 = vmatpush1.msra.mxu0 %v1358
        %1379 = vmatprep.subr.mxu0 0.0
        %1380 = vmatpush1.msra.mxu0 %v1359
        %1381 = vmatprep.subr.mxu0 0.0
        %1382 = vmatpush1.msra.mxu0 %v1360
        %1383 = vmatprep.subr.mxu0 0.0
        %1384 = vmatpush1.msra.mxu0 %v1361
        %1385 = vmatprep.subr.mxu0 0.0
        %1386 = vmatpush1.msra.mxu0 %v1362
        %1387 = vmatprep.subr.mxu0 0.0
        %1388 = vmatpush1.msra.mxu0 %v1363
        %1389 = vmatprep.subr.mxu0 0.0
        %1390 = vmatpush1.msra.mxu0 %v1364
        %1391 = vmatprep.subr.mxu0 0.0
        %1392 = vmatpush1.msra.mxu0 %v1365
        %1393 = vmatprep.subr.mxu0 0.0
        %1394 = vmatpush1.msra.mxu0 %v1366
        %1395 = vmatprep.subr.mxu0 0.0
        %1396 = vmatpush1.msra.mxu0 %v1367
        %1397 = vmatprep.subr.mxu0 0.0
        %1398 = vmatpush1.msra.mxu0 %v1368
        %1399 = vmatprep.subr.mxu0 0.0
        %1400 = vmatpush1.msra.mxu0 %v1369
        %1401 = vmatprep.subr.mxu0 0.0
        %1402 = vmatpush1.msra.mxu0 %v1370
        %1403 = vmatprep.subr.mxu0 0.0
        %1404 = vmatpush1.msra.mxu0 0.0
        %1405 = vmatprep.subr.mxu0 0.0
        %1406 = vmatpush1.msra.mxu0 0.0
        %1407 = vmatprep.subr.mxu0 0.0
        %1408 = vmatpush1.msra.mxu0 0.0
        %1409 = vmatprep.subr.mxu0 0.0
        %1410 = vmatpush1.msra.mxu0 0.0
        %1411 = vmatprep.subr.mxu0 0.0
        %1412 = vmatpush1.msra.mxu0 0.0
        %1413 = vmatprep.subr.mxu0 0.0
        %1414 = vmatpush1.msra.mxu0 0.0
        %1415 = vmatprep.subr.mxu0 0.0
        %1416 = vmatpush1.msra.mxu0 0.0
        %1417 = vmatprep.subr.mxu0 0.0
        %1418 = vmatpush1.msra.mxu0 0.0
        %1419 = vmatprep.subr.mxu0 0.0
        %1420 = vmatpush1.msra.mxu0 0.0
        %1421 = vmatprep.subr.mxu0 0.0
        %1422 = vmatpush1.msra.mxu0 0.0
        %1423 = vmatprep.subr.mxu0 0.0
        %1424 = vmatpush1.msra.mxu0 0.0
        %1425 = vmatprep.subr.mxu0 0.0
        %1426 = vmatpush1.msra.mxu0 0.0
        %1427 = vmatprep.subr.mxu0 0.0
        %1428 = vmatpush1.msra.mxu0 0.0
        %1429 = vmatprep.subr.mxu0 0.0
        %1430 = vmatpush1.msra.mxu0 0.0
        %1431 = vmatprep.subr.mxu0 0.0
        %1432 = vmatpush1.msra.mxu0 0.0
        %1433 = vmatprep.subr.mxu0 0.0
        %1434 = vmatpush1.msra.mxu0 0.0
        %1435 = vmatprep.mubr.f32.mxu0 0.0
        %1436 = vmatmul.mubr.f32.gmra.mrb[0].mxu0 %v1339
        %v1437 = vpop.f32.mrb[0].mxu0
        %v1438 = vadd.f32 0.0, %v1437
        %v1439 = vpop.f32.mrb[0].mxu0
        %1440 = vmatprep.mubr.f32.mxu0 0.0
        %1441 = vmatmul.mubr.f32.gmra.mrb[0].mxu0 %v1340
        %v1442 = vpop.f32.mrb[0].mxu0
        %v1443 = vadd.f32 0.0, %v1442
        %v1444 = vpop.f32.mrb[0].mxu0
        %1445 = vmatprep.mubr.f32.mxu0 0.0
        %1446 = vmatmul.mubr.f32.gmra.mrb[0].mxu0 %v1341
        %v1447 = vpop.f32.mrb[0].mxu0
        %v1448 = vadd.f32 0.0, %v1447
        %v1449 = vpop.f32.mrb[0].mxu0
        %1450 = vmatprep.mubr.f32.mxu0 0.0
        %1451 = vmatmul.mubr.f32.gmra.mrb[0].mxu0 %v1342
        %v1452 = vpop.f32.mrb[0].mxu0
        %v1453 = vadd.f32 0.0, %v1452
        %v1454 = vpop.f32.mrb[0].mxu0
        %1455 = vmatprep.mubr.f32.mxu0 0.0
        %1456 = vmatmul.mubr.f32.gmra.mrb[0].mxu0 %v1343
        %v1457 = vpop.f32.mrb[0].mxu0
        %v1458 = vadd.f32 0.0, %v1457
        %v1459 = vpop.f32.mrb[0].mxu0
        %1460 = vmatprep.mubr.f32.mxu0 0.0
        %1461 = vmatmul.mubr.f32.gmra.mrb[0].mxu0 %v1344
        %v1462 = vpop.f32.mrb[0].mxu0
        %v1463 = vadd.f32 0.0, %v1462
        %v1464 = vpop.f32.mrb[0].mxu0
        %1465 = vmatprep.mubr.f32.mxu0 0.0
        %1466 = vmatmul.mubr.f32.gmra.mrb[0].mxu0 %v1345
        %v1467 = vpop.f32.mrb[0].mxu0
        %v1468 = vadd.f32 0.0, %v1467
        %v1469 = vpop.f32.mrb[0].mxu0
        %1470 = vmatprep.mubr.f32.mxu0 0.0
        %1471 = vmatmul.mubr.f32.gmra.mrb[0].mxu0 %v1346
        %v1472 = vpop.f32.mrb[0].mxu0
        %v1473 = vadd.f32 0.0, %v1472
        %v1474 = vpop.f32.mrb[0].mxu0
        %1475 = vmatprep.mubr.f32.mxu0 0.0
        %1476 = vmatmul.mubr.f32.gmra.mrb[0].mxu0 %v1347
        %v1477 = vpop.f32.mrb[0].mxu0
        %v1478 = vadd.f32 0.0, %v1477
        %v1479 = vpop.f32.mrb[0].mxu0
        %1480 = vmatprep.mubr.f32.mxu0 0.0
        %1481 = vmatmul.mubr.f32.gmra.mrb[0].mxu0 %v1348
        %v1482 = vpop.f32.mrb[0].mxu0
        %v1483 = vadd.f32 0.0, %v1482
        %v1484 = vpop.f32.mrb[0].mxu0
        %1485 = vmatprep.mubr.f32.mxu0 0.0
        %1486 = vmatmul.mubr.f32.gmra.mrb[0].mxu0 %v1349
        %v1487 = vpop.f32.mrb[0].mxu0
        %v1488 = vadd.f32 0.0, %v1487
        %v1489 = vpop.f32.mrb[0].mxu0
        %1490 = vmatprep.mubr.f32.mxu0 0.0
        %1491 = vmatmul.mubr.f32.gmra.mrb[0].mxu0 %v1350
        %v1492 = vpop.f32.mrb[0].mxu0
        %v1493 = vadd.f32 0.0, %v1492
        %v1494 = vpop.f32.mrb[0].mxu0
        %1495 = vmatprep.mubr.f32.mxu0 0.0
        %1496 = vmatmul.mubr.f32.gmra.mrb[0].mxu0 %v1351
        %v1497 = vpop.f32.mrb[0].mxu0
        %v1498 = vadd.f32 0.0, %v1497
        %v1499 = vpop.f32.mrb[0].mxu0
        %1500 = vmatprep.mubr.f32.mxu0 0.0
        %1501 = vmatmul.mubr.f32.gmra.mrb[0].mxu0 %v1352
        %v1502 = vpop.f32.mrb[0].mxu0
        %v1503 = vadd.f32 0.0, %v1502
        %v1504 = vpop.f32.mrb[0].mxu0
        %1505 = vmatprep.mubr.f32.mxu0 0.0
        %1506 = vmatmul.mubr.f32.gmra.mrb[0].mxu0 %v1353
        %v1507 = vpop.f32.mrb[0].mxu0
        %v1508 = vadd.f32 0.0, %v1507
        %v1509 = vpop.f32.mrb[0].mxu0
        %1510 = vmatprep.mubr.f32.mxu0 0.0
        %1511 = vmatmul.mubr.f32.gmra.mrb[0].mxu0 %v1354
        %v1512 = vpop.f32.mrb[0].mxu0
        %v1513 = vadd.f32 0.0, %v1512
        %v1514 = vpop.f32.mrb[0].mxu0
        %1515 = vdwg.mxu0
        %vm1516 = vcmask 31744
        %v1517 = vsel %vm1516, %v1438, -inf
        %v1518 = vsel %vm1516, %v1443, -inf
        %v1519 = vsel %vm1516, %v1448, -inf
        %v1520 = vsel %vm1516, %v1453, -inf
        %v1521 = vsel %vm1516, %v1458, -inf
        %v1522 = vmax.f32 %v1517, %v1521
        %v1523 = vsel %vm1516, %v1463, -inf
        %v1524 = vmax.f32 %v1518, %v1523
        %v1525 = vsel %vm1516, %v1468, -inf
        %v1526 = vmax.f32 %v1519, %v1525
        %v1527 = vsel %vm1516, %v1473, -inf
        %v1528 = vmax.f32 %v1520, %v1527
        %v1529 = vsel %vm1516, %v1478, -inf
        %v1530 = vmax.f32 %v1522, %v1529
        %v1531 = vsel %vm1516, %v1483, -inf
        %v1532 = vmax.f32 %v1524, %v1531
        %v1533 = vsel %vm1516, %v1488, -inf
        %v1534 = vmax.f32 %v1526, %v1533
        %v1535 = vsel %vm1516, %v1493, -inf
        %v1536 = vmax.f32 %v1528, %v1535
        %v1537 = vsel %vm1516, %v1498, -inf
        %v1538 = vmax.f32 %v1530, %v1537
        %v1539 = vsel %vm1516, %v1503, -inf
        %v1540 = vmax.f32 %v1532, %v1539
        %v1541 = vsel %vm1516, %v1508, -inf
        %v1542 = vmax.f32 %v1534, %v1541
        %v1543 = vsel %vm1516, %v1513, -inf
        %v1544 = vmax.f32 %v1536, %v1543
        %v1545 = vmax.f32 %v1538, %v1540
        %v1546 = vmax.f32 %v1542, %v1544
        %v1547 = vmax.f32 %v1545, %v1546
        %v1548 = vrot.slane %v1547, 4
        %v1549 = vmax.f32 %v1547, %v1548
        %v1550 = vrot.slane %v1549, 2
        %v1551 = vmax.f32 %v1549, %v1550
        %v1552 = vrot.slane %v1551, 1
        %v1553 = vmax.f32 %v1551, %v1552
        %v1554 = vld [vmem:[#allocation4] sm:$0x1]
        %v1555 = vmax.f32 %v1554, %v1553
        %v1556 = vsub.f32 %v1554, %v1555
        %v1557 = vmul.f32 %v1556, 1.442695
        %v1558 = vpow.pop %v1557
        %v1560 = vlaneseq
        %v1561 = vshrl.u32 %v1560, 7
        %v1562 = vsub.s32 0, %v1561
        %v1563 = vrot.slane %v1555, %v1562
        %v1565 = vsub.f32 %v1438, %v1563
        %v1566 = vsub.f32 %v1443, %v1563
        %v1567 = vsub.f32 %v1448, %v1563
        %v1568 = vsub.f32 %v1453, %v1563
        %v1569 = vsub.f32 %v1458, %v1563
        %v1570 = vsub.f32 %v1463, %v1563
        %v1571 = vsub.f32 %v1468, %v1563
        %v1572 = vsub.f32 %v1473, %v1563
        %v1573 = vsub.f32 %v1478, %v1563
        %v1574 = vsub.f32 %v1483, %v1563
        %v1575 = vsub.f32 %v1488, %v1563
        %v1576 = vsub.f32 %v1493, %v1563
        %v1577 = vsub.f32 %v1498, %v1563
        %v1578 = vsub.f32 %v1503, %v1563
        %v1579 = vsub.f32 %v1508, %v1563
        %v1580 = vsub.f32 %v1513, %v1563
        %v1581 = vmul.f32 %v1565, 1.442695
        %v1582 = vpow.pop %v1581
        %v1583 = vmul.f32 %v1566, 1.442695
        %v1584 = vpow.pop %v1583
        %v1585 = vmul.f32 %v1567, 1.442695
        %v1586 = vpow.pop %v1585
        %v1587 = vmul.f32 %v1568, 1.442695
        %v1588 = vpow.pop %v1587
        %v1589 = vmul.f32 %v1569, 1.442695
        %v1590 = vpow.pop %v1589
        %v1591 = vmul.f32 %v1570, 1.442695
        %v1592 = vpow.pop %v1591
        %v1593 = vmul.f32 %v1571, 1.442695
        %v1594 = vpow.pop %v1593
        %v1595 = vmul.f32 %v1572, 1.442695
        %v1596 = vpow.pop %v1595
        %v1597 = vmul.f32 %v1573, 1.442695
        %v1598 = vpow.pop %v1597
        %v1599 = vmul.f32 %v1574, 1.442695
        %v1600 = vpow.pop %v1599
        %v1601 = vmul.f32 %v1575, 1.442695
        %v1602 = vpow.pop %v1601
        %v1603 = vmul.f32 %v1576, 1.442695
        %v1604 = vpow.pop %v1603
        %v1605 = vmul.f32 %v1577, 1.442695
        %v1606 = vpow.pop %v1605
        %v1607 = vmul.f32 %v1578, 1.442695
        %v1608 = vpow.pop %v1607
        %v1609 = vmul.f32 %v1579, 1.442695
        %v1610 = vpow.pop %v1609
        %v1611 = vmul.f32 %v1580, 1.442695
        %v1612 = vpow.pop %v1611
        %v1613 = vld [vmem:[%s8] sm:$0xf]
        %v1615 = vsel %vm1516, %v1558, 0
        %vm1617 = vcmask 1043456
        %v1619 = vsel %vm1617, %v1613, 0
        %1621 = vmatprep.subr.mxu0 0.0
        %1622 = vmatpush1.msra.mxu0 %v1619
        %1623 = vmatprep.subr.mxu0 0.0
        %1624 = vmatpush1.msra.mxu0 0.0
        %1625 = vmatprep.subr.mxu0 0.0
        %1626 = vmatpush1.msra.mxu0 0.0
        %1627 = vmatprep.subr.mxu0 0.0
        %1628 = vmatpush1.msra.mxu0 0.0
        %1629 = vmatprep.subr.mxu0 0.0
        %1630 = vmatpush1.msra.mxu0 0.0
        %1631 = vmatprep.subr.mxu0 0.0
        %1632 = vmatpush1.msra.mxu0 0.0
        %1633 = vmatprep.subr.mxu0 0.0
        %1634 = vmatpush1.msra.mxu0 0.0
        %1635 = vmatprep.subr.mxu0 0.0
        %1636 = vmatpush1.msra.mxu0 0.0
        %1637 = vmatprep.subr.mxu0 0.0
        %1638 = vmatpush1.msra.mxu0 0.0
        %1639 = vmatprep.subr.mxu0 0.0
        %1640 = vmatpush1.msra.mxu0 0.0
        %1641 = vmatprep.subr.mxu0 0.0
        %1642 = vmatpush1.msra.mxu0 0.0
        %1643 = vmatprep.subr.mxu0 0.0
        %1644 = vmatpush1.msra.mxu0 0.0
        %1645 = vmatprep.subr.mxu0 0.0
        %1646 = vmatpush1.msra.mxu0 0.0
        %1647 = vmatprep.subr.mxu0 0.0
        %1648 = vmatpush1.msra.mxu0 0.0
        %1649 = vmatprep.subr.mxu0 0.0
        %1650 = vmatpush1.msra.mxu0 0.0
        %1651 = vmatprep.subr.mxu0 0.0
        %1652 = vmatpush1.msra.mxu0 0.0
        %1653 = vmatprep.subr.mxu0 0.0
        %1654 = vmatpush1.msra.mxu0 0.0
        %1655 = vmatprep.subr.mxu0 0.0
        %1656 = vmatpush1.msra.mxu0 0.0
        %1657 = vmatprep.subr.mxu0 0.0
        %1658 = vmatpush1.msra.mxu0 0.0
        %1659 = vmatprep.subr.mxu0 0.0
        %1660 = vmatpush1.msra.mxu0 0.0
        %1661 = vmatprep.subr.mxu0 0.0
        %1662 = vmatpush1.msra.mxu0 0.0
        %1663 = vmatprep.subr.mxu0 0.0
        %1664 = vmatpush1.msra.mxu0 0.0
        %1665 = vmatprep.subr.mxu0 0.0
        %1666 = vmatpush1.msra.mxu0 0.0
        %1667 = vmatprep.subr.mxu0 0.0
        %1668 = vmatpush1.msra.mxu0 0.0
        %1669 = vmatprep.subr.mxu0 0.0
        %1670 = vmatpush1.msra.mxu0 0.0
        %1671 = vmatprep.subr.mxu0 0.0
        %1672 = vmatpush1.msra.mxu0 0.0
        %1673 = vmatprep.subr.mxu0 0.0
        %1674 = vmatpush1.msra.mxu0 0.0
        %1675 = vmatprep.subr.mxu0 0.0
        %1676 = vmatpush1.msra.mxu0 0.0
        %1677 = vmatprep.subr.mxu0 0.0
        %1678 = vmatpush1.msra.mxu0 0.0
        %1679 = vmatprep.subr.mxu0 0.0
        %1680 = vmatpush1.msra.mxu0 0.0
        %1681 = vmatprep.subr.mxu0 0.0
        %1682 = vmatpush1.msra.mxu0 0.0
        %1683 = vmatprep.subr.mxu0 0.0
        %1684 = vmatpush1.msra.mxu0 0.0
        %1685 = vmatprep.mubr.f32.mxu0 0.0
        %1686 = vmatmul.mubr.f32.gmra.mrb[0].mxu0 %v1615
        %v1687 = vpop.f32.mrb[0].mxu0
        %v1688 = vadd.f32 0.0, %v1687
        %v1689 = vpop.f32.mrb[0].mxu0
        %1690 = vdwg.mxu0
        %vm1691 = vcmask 24576
        %1692 = vst.msk [vmem:[#allocation4] sm:$0x1] %vm1691, %v1555
        %v1693 = vld [vmem:[%s8] sm:$0xf]
        %v1695 = vsel %vm1516, %v1582, 0
        %v1698 = vsel %vm1516, %v1584, 0
        %v1701 = vsel %vm1516, %v1586, 0
        %v1704 = vsel %vm1516, %v1588, 0
        %v1707 = vsel %vm1516, %v1590, 0
        %v1710 = vsel %vm1516, %v1592, 0
        %v1713 = vsel %vm1516, %v1594, 0
        %v1716 = vsel %vm1516, %v1596, 0
        %v1719 = vsel %vm1516, %v1598, 0
        %v1722 = vsel %vm1516, %v1600, 0
        %v1725 = vsel %vm1516, %v1602, 0
        %v1728 = vsel %vm1516, %v1604, 0
        %v1731 = vsel %vm1516, %v1606, 0
        %v1734 = vsel %vm1516, %v1608, 0
        %v1737 = vsel %vm1516, %v1610, 0
        %v1740 = vsel %vm1516, %v1612, 0
        %v1743 = vsel %vm1617, %v1693, 0
        %1745 = vmatprep.subr.mxu0 0.0
        %1746 = vmatpush1.msra.mxu0 %v1743
        %1747 = vmatprep.subr.mxu0 0.0
        %1748 = vmatpush1.msra.mxu0 0.0
        %1749 = vmatprep.subr.mxu0 0.0
        %1750 = vmatpush1.msra.mxu0 0.0
        %1751 = vmatprep.subr.mxu0 0.0
        %1752 = vmatpush1.msra.mxu0 0.0
        %1753 = vmatprep.subr.mxu0 0.0
        %1754 = vmatpush1.msra.mxu0 0.0
        %1755 = vmatprep.subr.mxu0 0.0
        %1756 = vmatpush1.msra.mxu0 0.0
        %1757 = vmatprep.subr.mxu0 0.0
        %1758 = vmatpush1.msra.mxu0 0.0
        %1759 = vmatprep.subr.mxu0 0.0
        %1760 = vmatpush1.msra.mxu0 0.0
        %1761 = vmatprep.subr.mxu0 0.0
        %1762 = vmatpush1.msra.mxu0 0.0
        %1763 = vmatprep.subr.mxu0 0.0
        %1764 = vmatpush1.msra.mxu0 0.0
        %1765 = vmatprep.subr.mxu0 0.0
        %1766 = vmatpush1.msra.mxu0 0.0
        %1767 = vmatprep.subr.mxu0 0.0
        %1768 = vmatpush1.msra.mxu0 0.0
        %1769 = vmatprep.subr.mxu0 0.0
        %1770 = vmatpush1.msra.mxu0 0.0
        %1771 = vmatprep.subr.mxu0 0.0
        %1772 = vmatpush1.msra.mxu0 0.0
        %1773 = vmatprep.subr.mxu0 0.0
        %1774 = vmatpush1.msra.mxu0 0.0
        %1775 = vmatprep.subr.mxu0 0.0
        %1776 = vmatpush1.msra.mxu0 0.0
        %1777 = vmatprep.subr.mxu0 0.0
        %1778 = vmatpush1.msra.mxu0 0.0
        %1779 = vmatprep.subr.mxu0 0.0
        %1780 = vmatpush1.msra.mxu0 0.0
        %1781 = vmatprep.subr.mxu0 0.0
        %1782 = vmatpush1.msra.mxu0 0.0
        %1783 = vmatprep.subr.mxu0 0.0
        %1784 = vmatpush1.msra.mxu0 0.0
        %1785 = vmatprep.subr.mxu0 0.0
        %1786 = vmatpush1.msra.mxu0 0.0
        %1787 = vmatprep.subr.mxu0 0.0
        %1788 = vmatpush1.msra.mxu0 0.0
        %1789 = vmatprep.subr.mxu0 0.0
        %1790 = vmatpush1.msra.mxu0 0.0
        %1791 = vmatprep.subr.mxu0 0.0
        %1792 = vmatpush1.msra.mxu0 0.0
        %1793 = vmatprep.subr.mxu0 0.0
        %1794 = vmatpush1.msra.mxu0 0.0
        %1795 = vmatprep.subr.mxu0 0.0
        %1796 = vmatpush1.msra.mxu0 0.0
        %1797 = vmatprep.subr.mxu0 0.0
        %1798 = vmatpush1.msra.mxu0 0.0
        %1799 = vmatprep.subr.mxu0 0.0
        %1800 = vmatpush1.msra.mxu0 0.0
        %1801 = vmatprep.subr.mxu0 0.0
        %1802 = vmatpush1.msra.mxu0 0.0
        %1803 = vmatprep.subr.mxu0 0.0
        %1804 = vmatpush1.msra.mxu0 0.0
        %1805 = vmatprep.subr.mxu0 0.0
        %1806 = vmatpush1.msra.mxu0 0.0
        %1807 = vmatprep.subr.mxu0 0.0
        %1808 = vmatpush1.msra.mxu0 0.0
        %1809 = vmatprep.mubr.f32.mxu0 0.0
        %1810 = vmatmul.mubr.f32.gmra.mrb[0].mxu0 %v1695
        %v1811 = vpop.f32.mrb[0].mxu0
        %v1812 = vadd.f32 0.0, %v1811
        %v1813 = vpop.f32.mrb[0].mxu0
        %1814 = vmatprep.mubr.f32.mxu0 0.0
        %1815 = vmatmul.mubr.f32.gmra.mrb[0].mxu0 %v1698
        %v1816 = vpop.f32.mrb[0].mxu0
        %v1817 = vadd.f32 0.0, %v1816
        %v1818 = vpop.f32.mrb[0].mxu0
        %1819 = vmatprep.mubr.f32.mxu0 0.0
        %1820 = vmatmul.mubr.f32.gmra.mrb[0].mxu0 %v1701
        %v1821 = vpop.f32.mrb[0].mxu0
        %v1822 = vadd.f32 0.0, %v1821
        %v1823 = vpop.f32.mrb[0].mxu0
        %1824 = vmatprep.mubr.f32.mxu0 0.0
        %1825 = vmatmul.mubr.f32.gmra.mrb[0].mxu0 %v1704
        %v1826 = vpop.f32.mrb[0].mxu0
        %v1827 = vadd.f32 0.0, %v1826
        %v1828 = vpop.f32.mrb[0].mxu0
        %1829 = vmatprep.mubr.f32.mxu0 0.0
        %1830 = vmatmul.mubr.f32.gmra.mrb[0].mxu0 %v1707
        %v1831 = vpop.f32.mrb[0].mxu0
        %v1832 = vadd.f32 0.0, %v1831
        %v1833 = vpop.f32.mrb[0].mxu0
        %1834 = vmatprep.mubr.f32.mxu0 0.0
        %1835 = vmatmul.mubr.f32.gmra.mrb[0].mxu0 %v1710
        %v1836 = vpop.f32.mrb[0].mxu0
        %v1837 = vadd.f32 0.0, %v1836
        %v1838 = vpop.f32.mrb[0].mxu0
        %1839 = vmatprep.mubr.f32.mxu0 0.0
        %1840 = vmatmul.mubr.f32.gmra.mrb[0].mxu0 %v1713
        %v1841 = vpop.f32.mrb[0].mxu0
        %v1842 = vadd.f32 0.0, %v1841
        %v1843 = vpop.f32.mrb[0].mxu0
        %1844 = vmatprep.mubr.f32.mxu0 0.0
        %1845 = vmatmul.mubr.f32.gmra.mrb[0].mxu0 %v1716
        %v1846 = vpop.f32.mrb[0].mxu0
        %v1847 = vadd.f32 0.0, %v1846
        %v1848 = vpop.f32.mrb[0].mxu0
        %1849 = vmatprep.mubr.f32.mxu0 0.0
        %1850 = vmatmul.mubr.f32.gmra.mrb[0].mxu0 %v1719
        %v1851 = vpop.f32.mrb[0].mxu0
        %v1852 = vadd.f32 0.0, %v1851
        %v1853 = vpop.f32.mrb[0].mxu0
        %1854 = vmatprep.mubr.f32.mxu0 0.0
        %1855 = vmatmul.mubr.f32.gmra.mrb[0].mxu0 %v1722
        %v1856 = vpop.f32.mrb[0].mxu0
        %v1857 = vadd.f32 0.0, %v1856
        %v1858 = vpop.f32.mrb[0].mxu0
        %1859 = vmatprep.mubr.f32.mxu0 0.0
        %1860 = vmatmul.mubr.f32.gmra.mrb[0].mxu0 %v1725
        %v1861 = vpop.f32.mrb[0].mxu0
        %v1862 = vadd.f32 0.0, %v1861
        %v1863 = vpop.f32.mrb[0].mxu0
        %1864 = vmatprep.mubr.f32.mxu0 0.0
        %1865 = vmatmul.mubr.f32.gmra.mrb[0].mxu0 %v1728
        %v1866 = vpop.f32.mrb[0].mxu0
        %v1867 = vadd.f32 0.0, %v1866
        %v1868 = vpop.f32.mrb[0].mxu0
        %1869 = vmatprep.mubr.f32.mxu0 0.0
        %1870 = vmatmul.mubr.f32.gmra.mrb[0].mxu0 %v1731
        %v1871 = vpop.f32.mrb[0].mxu0
        %v1872 = vadd.f32 0.0, %v1871
        %v1873 = vpop.f32.mrb[0].mxu0
        %1874 = vmatprep.mubr.f32.mxu0 0.0
        %1875 = vmatmul.mubr.f32.gmra.mrb[0].mxu0 %v1734
        %v1876 = vpop.f32.mrb[0].mxu0
        %v1877 = vadd.f32 0.0, %v1876
        %v1878 = vpop.f32.mrb[0].mxu0
        %1879 = vmatprep.mubr.f32.mxu0 0.0
        %1880 = vmatmul.mubr.f32.gmra.mrb[0].mxu0 %v1737
        %v1881 = vpop.f32.mrb[0].mxu0
        %v1882 = vadd.f32 0.0, %v1881
        %v1883 = vpop.f32.mrb[0].mxu0
        %1884 = vmatprep.mubr.f32.mxu0 0.0
        %1885 = vmatmul.mubr.f32.gmra.mrb[0].mxu0 %v1740
        %v1886 = vpop.f32.mrb[0].mxu0
        %v1887 = vadd.f32 0.0, %v1886
        %v1888 = vpop.f32.mrb[0].mxu0
        %1889 = vdwg.mxu0
        %v1890 = vmul.f32 %v861, %v1812
        %v1891 = vmul.f32 %v865, %v1817
        %v1892 = vmul.f32 %v871, %v1822
        %v1893 = vmul.f32 %v875, %v1827
        %v1894 = vmul.f32 %v881, %v1832
        %v1895 = vmul.f32 %v885, %v1837
        %v1896 = vmul.f32 %v891, %v1842
        %v1897 = vmul.f32 %v895, %v1847
        %v1898 = vmul.f32 %v901, %v1852
        %v1899 = vmul.f32 %v905, %v1857
        %v1900 = vmul.f32 %v911, %v1862
        %v1901 = vmul.f32 %v915, %v1867
        %v1902 = vmul.f32 %v921, %v1872
        %v1903 = vmul.f32 %v925, %v1877
        %v1904 = vmul.f32 %v931, %v1882
        %v1905 = vmul.f32 %v935, %v1887
        %v1906 = vpack.c.bf16 %v1891, %v1890
        %v1907 = vpack.c.bf16 %v1817, %v1812
        %v1908 = vpack.c.bf16 %v1893, %v1892
        %v1909 = vpack.c.bf16 %v1827, %v1822
        %v1910 = vpack.c.bf16 %v1895, %v1894
        %v1911 = vpack.c.bf16 %v1837, %v1832
        %v1912 = vpack.c.bf16 %v1897, %v1896
        %v1913 = vpack.c.bf16 %v1847, %v1842
        %v1914 = vpack.c.bf16 %v1899, %v1898
        %v1915 = vpack.c.bf16 %v1857, %v1852
        %v1916 = vpack.c.bf16 %v1901, %v1900
        %v1917 = vpack.c.bf16 %v1867, %v1862
        %v1918 = vpack.c.bf16 %v1903, %v1902
        %v1919 = vpack.c.bf16 %v1877, %v1872
        %v1920 = vpack.c.bf16 %v1905, %v1904
        %v1921 = vpack.c.bf16 %v1887, %v1882
        %1930 = vxpose.xlu0.c.b16.start [1/8] %v973, 128
        %1931 = vxpose.xlu0.c.b16.cont [2/8] %v974, 128
        %1932 = vxpose.xlu0.c.b16.cont [3/8] %v975, 128
        %1933 = vxpose.xlu0.c.b16.cont [4/8] %v976, 128
        %1934 = vxpose.xlu0.c.b16.cont [5/8] %v977, 128
        %1935 = vxpose.xlu0.c.b16.cont [6/8] %v978, 128
        %1936 = vxpose.xlu0.c.b16.cont [7/8] %v979, 128
        %1937 = vxpose.xlu0.c.b16.end [8/8] %v980, 128
        %v1938 = vpop.trf.xlu0
        %v1939 = vpop.trf.xlu0
        %v1940 = vpop.trf.xlu0
        %v1941 = vpop.trf.xlu0
        %v1942 = vpop.trf.xlu0
        %v1943 = vpop.trf.xlu0
        %v1944 = vpop.trf.xlu0
        %v1945 = vpop.trf.xlu0
        %1946 = vmatprep.subr.bf16.mxu0 %v1907
        %1947 = vmatpush1.bf16.msra.mxu0 %v1906
        %1948 = vmatprep.subr.bf16.mxu0 %v1909
        %1949 = vmatpush1.bf16.msra.mxu0 %v1908
        %1950 = vmatprep.subr.bf16.mxu0 %v1911
        %1951 = vmatpush1.bf16.msra.mxu0 %v1910
        %1952 = vmatprep.subr.bf16.mxu0 %v1913
        %1953 = vmatpush1.bf16.msra.mxu0 %v1912
        %1954 = vmatprep.subr.bf16.mxu0 %v1915
        %1955 = vmatpush1.bf16.msra.mxu0 %v1914
        %1956 = vmatprep.subr.bf16.mxu0 %v1917
        %1957 = vmatpush1.bf16.msra.mxu0 %v1916
        %1958 = vmatprep.subr.bf16.mxu0 %v1919
        %1959 = vmatpush1.bf16.msra.mxu0 %v1918
        %1960 = vmatprep.subr.bf16.mxu0 %v1921
        %1961 = vmatpush1.bf16.msra.mxu0 %v1920
        %1962 = vmatprep.subr.bf16.mxu0 0
        %1963 = vmatpush1.bf16.msra.mxu0 0
        %1964 = vmatprep.subr.bf16.mxu0 0
        %1965 = vmatpush1.bf16.msra.mxu0 0
        %1966 = vmatprep.subr.bf16.mxu0 0
        %1967 = vmatpush1.bf16.msra.mxu0 0
        %1968 = vmatprep.subr.bf16.mxu0 0
        %1969 = vmatpush1.bf16.msra.mxu0 0
        %1970 = vmatprep.subr.bf16.mxu0 0
        %1971 = vmatpush1.bf16.msra.mxu0 0
        %1972 = vmatprep.subr.bf16.mxu0 0
        %1973 = vmatpush1.bf16.msra.mxu0 0
        %1974 = vmatprep.subr.bf16.mxu0 0
        %1975 = vmatpush1.bf16.msra.mxu0 0
        %1976 = vmatprep.subr.bf16.mxu0 0
        %1977 = vmatpush1.bf16.msra.mxu0 0
        %1978 = vmatprep.mubr.bf16.mxu0 0
        %1979 = vmatmul.mubr.bf16.gmra.mrb[0].mxu0 %v1938
        %v1980 = vpop.f32.mrb[0].mxu0
        %v1981 = vadd.f32 0.0, %v1980
        %v1982 = vpop.f32.mrb[0].mxu0
        %v1983 = vadd.f32 0.0, %v1982
        %v1984 = vpop.f32.mrb[0].mxu0
        %v1985 = vadd.f32 0.0, %v1984
        %v1986 = vpop.f32.mrb[0].mxu0
        %v1987 = vadd.f32 0.0, %v1986
        %1988 = vmatprep.mubr.bf16.mxu0 0
        %1989 = vmatmul.mubr.bf16.gmra.mrb[0].mxu0 %v1939
        %v1990 = vpop.f32.mrb[0].mxu0
        %v1991 = vadd.f32 0.0, %v1990
        %v1992 = vpop.f32.mrb[0].mxu0
        %v1993 = vadd.f32 0.0, %v1992
        %v1994 = vpop.f32.mrb[0].mxu0
        %v1995 = vadd.f32 0.0, %v1994
        %v1996 = vpop.f32.mrb[0].mxu0
        %v1997 = vadd.f32 0.0, %v1996
        %1998 = vmatprep.mubr.bf16.mxu0 0
        %1999 = vmatmul.mubr.bf16.gmra.mrb[0].mxu0 %v1940
        %v2000 = vpop.f32.mrb[0].mxu0
        %v2001 = vadd.f32 0.0, %v2000
        %v2002 = vpop.f32.mrb[0].mxu0
        %v2003 = vadd.f32 0.0, %v2002
        %v2004 = vpop.f32.mrb[0].mxu0
        %v2005 = vadd.f32 0.0, %v2004
        %v2006 = vpop.f32.mrb[0].mxu0
        %v2007 = vadd.f32 0.0, %v2006
        %2008 = vmatprep.mubr.bf16.mxu0 0
        %2009 = vmatmul.mubr.bf16.gmra.mrb[0].mxu0 %v1941
        %v2010 = vpop.f32.mrb[0].mxu0
        %v2011 = vadd.f32 0.0, %v2010
        %v2012 = vpop.f32.mrb[0].mxu0
        %v2013 = vadd.f32 0.0, %v2012
        %v2014 = vpop.f32.mrb[0].mxu0
        %v2015 = vadd.f32 0.0, %v2014
        %v2016 = vpop.f32.mrb[0].mxu0
        %v2017 = vadd.f32 0.0, %v2016
        %2018 = vdwg.mxu0
        %v2019 = vld [vmem:[#allocation6] sm:$0xff]
        %v2020 = vld [vmem:[#allocation6 + $0x8] sm:$0xff]
        %v2021 = vld [vmem:[#allocation6 + $0x10] sm:$0xff]
        %v2022 = vld [vmem:[#allocation6 + $0x18] sm:$0xff]
        %v2023 = vld [vmem:[#allocation6 + $0x20] sm:$0xff]
        %v2024 = vld [vmem:[#allocation6 + $0x28] sm:$0xff]
        %v2025 = vld [vmem:[#allocation6 + $0x30] sm:$0xff]
        %v2026 = vld [vmem:[#allocation6 + $0x38] sm:$0xff]
        %v2027 = vlaneseq
        %v2028 = vshrl.u32 %v2027, 7
        %v2029 = vsub.s32 0, %v2028
        %v2030 = vrot.slane %v1688, %v2029
        %v2031 = vmul.f32 %v2030, %v2019
        %v2032 = vmul.f32 %v2030, %v2020
        %v2033 = vmul.f32 %v2030, %v2021
        %v2034 = vmul.f32 %v2030, %v2022
        %v2035 = vmul.f32 %v2030, %v2023
        %v2036 = vmul.f32 %v2030, %v2024
        %v2037 = vmul.f32 %v2030, %v2025
        %v2038 = vmul.f32 %v2030, %v2026
        %v2039 = vadd.f32 %v2031, %v1981
        %v2040 = vadd.f32 %v2032, %v1985
        %v2041 = vadd.f32 %v2033, %v1991
        %v2042 = vadd.f32 %v2034, %v1995
        %v2043 = vadd.f32 %v2035, %v2001
        %v2044 = vadd.f32 %v2036, %v2005
        %v2045 = vadd.f32 %v2037, %v2011
        %v2046 = vadd.f32 %v2038, %v2015
        %2047 = vst [vmem:[#allocation6] sm:$0xff] %v2039
        %2048 = vst [vmem:[#allocation6 + $0x8] sm:$0xff] %v2040
        %2049 = vst [vmem:[#allocation6 + $0x10] sm:$0xff] %v2041
        %2050 = vst [vmem:[#allocation6 + $0x18] sm:$0xff] %v2042
        %2051 = vst [vmem:[#allocation6 + $0x20] sm:$0xff] %v2043
        %2052 = vst [vmem:[#allocation6 + $0x28] sm:$0xff] %v2044
        %2053 = vst [vmem:[#allocation6 + $0x30] sm:$0xff] %v2045
        %2054 = vst [vmem:[#allocation6 + $0x38] sm:$0xff] %v2046
        %v2055 = vld [vmem:[#allocation5] sm:$0xff]
        %v2056 = vld [vmem:[#allocation5 + $0x8] sm:$0xff]
        %v2057 = vld [vmem:[#allocation5 + $0x10] sm:$0xff]
        %v2058 = vld [vmem:[#allocation5 + $0x18] sm:$0xff]
        %v2059 = vld [vmem:[#allocation5 + $0x20] sm:$0xff]
        %v2060 = vld [vmem:[#allocation5 + $0x28] sm:$0xff]
        %v2061 = vld [vmem:[#allocation5 + $0x30] sm:$0xff]
        %v2062 = vld [vmem:[#allocation5 + $0x38] sm:$0xff]
        %v2063 = vmul.f32 %v2030, %v2055
        %v2064 = vmul.f32 %v2030, %v2056
        %v2065 = vmul.f32 %v2030, %v2057
        %v2066 = vmul.f32 %v2030, %v2058
        %v2067 = vmul.f32 %v2030, %v2059
        %v2068 = vmul.f32 %v2030, %v2060
        %v2069 = vmul.f32 %v2030, %v2061
        %v2070 = vmul.f32 %v2030, %v2062
        %v2071 = vadd.f32 %v2063, %v1983
        %v2072 = vadd.f32 %v2064, %v1987
        %v2073 = vadd.f32 %v2065, %v1993
        %v2074 = vadd.f32 %v2066, %v1997
        %v2075 = vadd.f32 %v2067, %v2003
        %v2076 = vadd.f32 %v2068, %v2007
        %v2077 = vadd.f32 %v2069, %v2013
        %v2078 = vadd.f32 %v2070, %v2017
        %2079 = vst [vmem:[#allocation5] sm:$0xff] %v2071
        %2080 = vst [vmem:[#allocation5 + $0x8] sm:$0xff] %v2072
        %2081 = vst [vmem:[#allocation5 + $0x10] sm:$0xff] %v2073
        %2082 = vst [vmem:[#allocation5 + $0x18] sm:$0xff] %v2074
        %2083 = vst [vmem:[#allocation5 + $0x20] sm:$0xff] %v2075
        %2084 = vst [vmem:[#allocation5 + $0x28] sm:$0xff] %v2076
        %2085 = vst [vmem:[#allocation5 + $0x30] sm:$0xff] %v2077
        %2086 = vst [vmem:[#allocation5 + $0x38] sm:$0xff] %v2078
        %p2087 = scmp.eq.s32.totalorder %s22, 1
        // Predicated region
        $region65: #{tpu_custom_call.1} parent=59 // pred_check
          %p2088 = pneg %p2087
        $region66: #{tpu_custom_call.1} parent=59 // pred_check_branch
          %2090 = sbr.rel (%p2088) target = $region68
        $region67: #{tpu_custom_call.1} parent=59 // pred_region
          %v2091 = vld [vmem:[#allocation6] sm:$0xff]
          %v2092 = vld [vmem:[#allocation6 + $0x8] sm:$0xff]
          %v2093 = vld [vmem:[#allocation6 + $0x10] sm:$0xff]
          %v2094 = vld [vmem:[#allocation6 + $0x18] sm:$0xff]
          %v2095 = vld [vmem:[#allocation6 + $0x20] sm:$0xff]
          %v2096 = vld [vmem:[#allocation6 + $0x28] sm:$0xff]
          %v2097 = vld [vmem:[#allocation6 + $0x30] sm:$0xff]
          %v2098 = vld [vmem:[#allocation6 + $0x38] sm:$0xff]
          %v2099 = vld [vmem:[#allocation5] sm:$0xff]
          %v2100 = vld [vmem:[#allocation5 + $0x8] sm:$0xff]
          %v2101 = vld [vmem:[#allocation5 + $0x10] sm:$0xff]
          %v2102 = vld [vmem:[#allocation5 + $0x18] sm:$0xff]
          %v2103 = vld [vmem:[#allocation5 + $0x20] sm:$0xff]
          %v2104 = vld [vmem:[#allocation5 + $0x28] sm:$0xff]
          %v2105 = vld [vmem:[#allocation5 + $0x30] sm:$0xff]
          %v2106 = vld [vmem:[#allocation5 + $0x38] sm:$0xff]
          %v2107 = vadd.f32 %v2099, 1e-16
          %v2108 = vadd.f32 %v2100, 1e-16
          %v2109 = vadd.f32 %v2101, 1e-16
          %v2110 = vadd.f32 %v2102, 1e-16
          %v2111 = vadd.f32 %v2103, 1e-16
          %v2112 = vadd.f32 %v2104, 1e-16
          %v2113 = vadd.f32 %v2105, 1e-16
          %v2114 = vadd.f32 %v2106, 1e-16
          %v2115 = vrcp.pop %v2107
          %v2116 = vrcp.pop %v2108
          %v2117 = vrcp.pop %v2109
          %v2118 = vrcp.pop %v2110
          %v2119 = vrcp.pop %v2111
          %v2120 = vrcp.pop %v2112
          %v2121 = vrcp.pop %v2113
          %v2122 = vrcp.pop %v2114
          %v2123 = vmul.f32 %v2091, %v2115
          %v2124 = vmul.f32 %v2092, %v2116
          %v2125 = vmul.f32 %v2093, %v2117
          %v2126 = vmul.f32 %v2094, %v2118
          %v2127 = vmul.f32 %v2095, %v2119
          %v2128 = vmul.f32 %v2096, %v2120
          %v2129 = vmul.f32 %v2097, %v2121
          %v2130 = vmul.f32 %v2098, %v2122
          %2131 = vst [vmem:[#allocation7] sm:$0xff] %v2123
          %2132 = vst [vmem:[#allocation7 + $0x8] sm:$0xff] %v2124
          %2133 = vst [vmem:[#allocation7 + $0x10] sm:$0xff] %v2125
          %2134 = vst [vmem:[#allocation7 + $0x18] sm:$0xff] %v2126
          %2135 = vst [vmem:[#allocation7 + $0x20] sm:$0xff] %v2127
          %2136 = vst [vmem:[#allocation7 + $0x28] sm:$0xff] %v2128
          %2137 = vst [vmem:[#allocation7 + $0x30] sm:$0xff] %v2129
          %2138 = vst [vmem:[#allocation7 + $0x38] sm:$0xff] %v2130
        $region68: #{tpu_custom_call.1} parent=59 // pred_fallthru
          _
        // Predicated region
        $region69: #{tpu_custom_call.1} parent=59 // pred_check
          %p2139 = pneg %p260
        $region70: #{tpu_custom_call.1} parent=59 // pred_check_branch
          %2141 = sbr.rel (%p2139) target = $region72
        $region71: #{tpu_custom_call.1} parent=59 // pred_region
          %s2143 = ssub.s32 1024, 1024
          %2144 = vsyncadd [#allocation8], %s2143
          %s2145 = sshll.u32 [#allocation7], 4
          %s2146 = int_to_ptr.vmem [resolvable:$true] %s2145
          %2151 = dma.vmem_to_hbm [thread:$0]  %s2146, 1024, %s10, [#allocation8], 128, 128, 8
        $region72: #{tpu_custom_call.1} parent=59 // pred_fallthru
          _
        // Predicated region
        $region73: #{tpu_custom_call.1} parent=59 // pred_check
          %p2152 = pneg %p260
        $region74: #{tpu_custom_call.1} parent=59 // pred_check_branch
          %2154 = sbr.rel (%p2152) target = $region76
        $region75: #{tpu_custom_call.1} parent=59 // pred_region
          %2155 = dma.done [#allocation8], 1024
        $region76: #{tpu_custom_call.1} parent=59 // pred_fallthru
          _
      $region60: #{tpu_custom_call.1} parent=5 // pred_fallthru
        _
      %p2156 = scmp.le.s32.totalorder 2, %s17
      // Predicated region
      $region77: #{tpu_custom_call.1} parent=5 // pred_check
        %p2157 = pneg %p2156
      $region78: #{tpu_custom_call.1} parent=5 // pred_check_branch
        %2159 = sbr.rel (%p2157) target = $region80
      $region79: #{tpu_custom_call.1} parent=5 // pred_region
        %s2160 = ssub.s32 %s17, 2
      $region80: #{tpu_custom_call.1} parent=5 // pred_fallthru
        _
    $region6: #{tpu_custom_call.1} parent=1 // loop_footer
      %s21 = sadd.s32 1, %s17
    $region7: #{tpu_custom_call.1} parent=1 // loop_footer_branch
      %16 = sbr.rel target = $region3
    $region8: #{tpu_custom_call.1} parent=1 // loop_exit
      _
    %2161 = vsyncpa [#allocation8], 1
    %s2162 = scalar_lea.sflag [#allocation8], 1
    %2163 = vsyncpa %s2162, 1

</llo_original>
